<compile_context>
chip_gen: v5e
topology: v5e:2x2
jax: 0.10.0
libtpu: 0.0.40
codegen_flags: <defaults>
</compile_context>

<pallas_src>
import jax
import jax.numpy as jnp
from jax.experimental import pallas as pl
from jax.experimental.pallas import tpu as pltpu


def _pick_tile_k(in_features, max_tile_k):
    """Pick the k-tile width.

    The k tile is either the full feature dim (small IN, single k block) or a
    multiple of 128 (BlockSpec lane-dim rule for the (OUT, tile_k) weight
    blocks).  Returns (tile_k, padded_in_features).
    """
    if in_features <= max_tile_k:
        return in_features, in_features
    cap = max(128, max_tile_k - max_tile_k % 128)
    for cand in range(cap, 127, -128):        # prefer an exact divisor
        if in_features % cand == 0:
            return cand, in_features
    k_blocks = -(-in_features // cap)         # remainder handled in-kernel
    return cap, k_blocks * cap


def _make_kernel(out_features, n_even, in_features, tile_k, matmul_in_bf16):
    rem = in_features % tile_k                # valid columns in the last k block (0 -> full)

    def kernel(xT_ref, w_ref, pw_ref, pb_ref, o_ref, re_ref, ro_ref, acc_ref):
        k_id = pl.program_id(1)
        nk = pl.num_programs(1)

        @pl.when(k_id == 0)
        def _init():
            re_ref[...] = jnp.zeros_like(re_ref)
            ro_ref[...] = jnp.zeros_like(ro_ref)
            acc_ref[...] = jnp.zeros_like(acc_ref)

        # ---- projection partial sum on the MXU:  acc += pw_blk @ x_blk ----
        # (padded k columns are zero, so they contribute nothing)
        mm_dtype = jnp.bfloat16 if matmul_in_bf16 else jnp.float32
        x_blk = xT_ref[...].astype(mm_dtype)                      # (tile_k, tile_n)
        pw_blk = pw_ref[...].astype(mm_dtype)                     # (OUT, tile_k)
        acc_ref[...] += jnp.dot(pw_blk, x_blk, preferred_element_type=jnp.float32)

        # ---- AEG recurrence (VPU), select-free via even/odd output split ----
        # TODO(synk): for very large in_features, wrap this per-tile unroll in a
        # lax.fori_loop over k-pairs with unroll=8 to bound code size further.
        def aeg_steps(ncols):
            r_e = re_ref[...]                                     # (n_even, tile_n)
            r_o = ro_ref[...]                                     # (n_odd,  tile_n)
            for j in range(ncols):                                # static unroll inside tile
                a_e = w_ref[0:n_even, j:j + 1].astype(jnp.float32)              # (n_even, 1)
                a_o = w_ref[n_even:out_features, j:j + 1].astype(jnp.float32)   # (n_odd, 1)
                b = xT_ref[j:j + 1, :].astype(jnp.float32)                      # (1, tile_n)
                # global k = k_id * tile_k + j; tile_k is even whenever nk > 1,
                # so parity(global k) == parity(j).
                if j % 2 == 0:            # k even
                    r_e = (r_e + a_e) * b         # even o: (o + k) even
                    r_o = (r_o + b) * a_o         # odd  o: (o + k) odd
                else:                     # k odd
                    r_e = (r_e + b) * a_e
                    r_o = (r_o + a_o) * b
            re_ref[...] = r_e
            ro_ref[...] = r_o

        if rem == 0:
            aeg_steps(tile_k)
        else:
            @pl.when(k_id != nk - 1)
            def _full():
                aeg_steps(tile_k)

            @pl.when(k_id == nk - 1)
            def _tail():
                aeg_steps(rem)

        # ---- finalize: sigmoid(aeg) * (proj + bias) ----
        @pl.when(k_id == nk - 1)
        def _done():
            proj = acc_ref[...] + pb_ref[...].astype(jnp.float32)               # (OUT, tile_n)
            r = jnp.concatenate([re_ref[...], ro_ref[...]], axis=0)             # (OUT, tile_n)
            o_ref[...] = (jax.nn.sigmoid(r) * proj).astype(o_ref.dtype)

    return kernel


def semi_linear(x, weight, proj_w, proj_b, *, tile_n=256, max_tile_k=512,
                matmul_in_bf16=False):
    """x: (N, IN); weight: (1, OUT, IN); proj_w: (OUT, IN); proj_b: (OUT,)."""
    n, in_features = x.shape
    out_features = weight.shape[1]
    n_even = (out_features + 1) // 2

    # Row permutation [even o | odd o] -> select-free parity handling in-kernel.
    perm = jnp.concatenate([jnp.arange(0, out_features, 2),
                            jnp.arange(1, out_features, 2)])
    inv_perm = jnp.argsort(perm)

    w_p = weight[0][perm, :]                                   # (OUT, IN)
    pw_p = proj_w[perm, :]                                     # (OUT, IN)
    pb_p = proj_b[perm].reshape(out_features, 1)               # (OUT, 1)

    # Tiling: batch on lanes (padded to a multiple of tile_n); k tiled so the
    # per-step VMEM working set stays small regardless of in_features.
    tile_k, in_pad = _pick_tile_k(in_features, max_tile_k)
    n_blocks = -(-n // tile_n)
    n_pad = n_blocks * tile_n
    k_blocks = in_pad // tile_k

    xT = jnp.pad(jnp.transpose(x), ((0, in_pad - in_features), (0, n_pad - n)))
    w_p = jnp.pad(w_p, ((0, 0), (0, in_pad - in_features)))
    pw_p = jnp.pad(pw_p, ((0, 0), (0, in_pad - in_features)))

    kernel = _make_kernel(out_features, n_even, in_features, tile_k, matmul_in_bf16)

    out_perm = pl.pallas_call(
        kernel,
        out_shape=jax.ShapeDtypeStruct((out_features, n_pad), x.dtype),
        grid_spec=pltpu.PrefetchScalarGridSpec(
            num_scalar_prefetch=0,
            grid=(n_blocks, k_blocks),                           # k innermost (reduction)
            in_specs=[
                pl.BlockSpec((tile_k, tile_n), lambda i, k: (k, i)),        # x^T
                pl.BlockSpec((out_features, tile_k), lambda i, k: (0, k)),  # AEG W (permuted)
                pl.BlockSpec((out_features, tile_k), lambda i, k: (0, k)),  # proj W (permuted)
                pl.BlockSpec((out_features, 1), lambda i, k: (0, 0)),       # proj bias
            ],
            out_specs=pl.BlockSpec((out_features, tile_n), lambda i, k: (0, i)),
            scratch_shapes=[
                pltpu.VMEM((n_even, tile_n), jnp.float32),                  # r, even o rows
                pltpu.VMEM((out_features - n_even, tile_n), jnp.float32),   # r, odd o rows
                pltpu.VMEM((out_features, tile_n), jnp.float32),            # proj accumulator
            ],
        ),
        compiler_params=pltpu.CompilerParams(
            # batch axis parallel -> both TensorCores on v7x; no-op on v5e/v6e.
            dimension_semantics=("parallel", "arbitrary"),
        ),
    )(xT, w_p, pw_p, pb_p)

    # Undo the layout plumbing: un-permute rows, drop batch padding, transpose.
    return jnp.transpose(out_perm[inv_perm][:, :n])


def semi_linear_ref(x, weight, proj_w, proj_b):
    """Pure-JAX reference mirroring the PyTorch module."""
    n, in_features = x.shape
    out_features = weight.shape[1]
    w = weight[0]                                   # (OUT, IN)
    o_idx = jnp.arange(out_features)[None, :]       # (1, OUT)
    xf = x.astype(jnp.float32)
    r = jnp.zeros((n, out_features), jnp.float32)
    for k in range(in_features):
        a_k = w[:, k][None, :].astype(jnp.float32)  # (1, OUT)
        b_k = xf[:, k][:, None]                     # (N, 1)
        mask = ((o_idx + k) % 2) == 0
        r = jnp.where(mask, (r + a_k) * b_k, (r + b_k) * a_k)
    proj = xf @ proj_w.astype(jnp.float32).T + proj_b.astype(jnp.float32)[None, :]
    return (jax.nn.sigmoid(r) * proj).astype(x.dtype)


if __name__ == "__main__":
    def make_inputs(key, batch, in_features, out_features):
        k_x, k_w, k_pw, k_pb = jax.random.split(key, 4)
        # kaiming_normal_ on (1, OUT, IN): fan_in = OUT * IN, std = sqrt(2 / fan_in)
        std = (2.0 / (out_features * in_features)) ** 0.5
        weight = std * jax.random.normal(k_w, (1, out_features, in_features), jnp.float32)
        # nn.Linear default init: U(-1/sqrt(IN), 1/sqrt(IN))
        bound = 1.0 / (in_features ** 0.5)
        proj_w = jax.random.uniform(k_pw, (out_features, in_features), jnp.float32,
                                    minval=-bound, maxval=bound)
        proj_b = jax.random.uniform(k_pb, (out_features,), jnp.float32,
                                    minval=-bound, maxval=bound)
        x = jax.random.normal(k_x, (batch, in_features), jnp.float32)
        return x, weight, proj_w, proj_b

    # Small config consistent with the module (single batch/k tile path, f32 MXU).
    x, weight, proj_w, proj_b = make_inputs(jax.random.PRNGKey(0),
                                            batch=8, in_features=32, out_features=16)
    out = jax.block_until_ready(semi_linear(x, weight, proj_w, proj_b))
    ref = jax.block_until_ready(semi_linear_ref(x, weight, proj_w, proj_b))
    assert out.shape == ref.shape == (8, 16)
    assert jnp.allclose(out, ref, atol=1e-4, rtol=1e-4), \
        float(jnp.max(jnp.abs(out - ref)))

    # Exercise the multi-tile grid paths: several batch tiles, two k tiles with a
    # remainder k block, and the optional bf16 MXU projection.
    x2, w2, pw2, pb2 = make_inputs(jax.random.PRNGKey(1),
                                   batch=300, in_features=200, out_features=16)
    out2 = jax.block_until_ready(
        semi_linear(x2, w2, pw2, pb2, tile_n=128, max_tile_k=128, matmul_in_bf16=True))
    ref2 = jax.block_until_ready(semi_linear_ref(x2, w2, pw2, pb2))
    assert out2.shape == ref2.shape == (300, 16)
    assert jnp.allclose(out2, ref2, atol=5e-2, rtol=5e-2), \
        float(jnp.max(jnp.abs(out2 - ref2)))

    print("KERNEL_OK")
</pallas_src>

<mosaic_0001>
module attributes {stable_mosaic.version = 11 : i64} {
  func.func @kernel(%arg0: i32, %arg1: i32, %arg2: memref<32x256xf32, #tpu.memory_space<vmem>>, %arg3: memref<16x32xf32, #tpu.memory_space<vmem>>, %arg4: memref<16x32xf32, #tpu.memory_space<vmem>>, %arg5: memref<16x1xf32, #tpu.memory_space<vmem>>, %arg6: memref<16x256xf32, #tpu.memory_space<vmem>>, %arg7: memref<8x256xf32, #tpu.memory_space<vmem>>, %arg8: memref<8x256xf32, #tpu.memory_space<vmem>>, %arg9: memref<16x256xf32, #tpu.memory_space<vmem>>) attributes {dimension_semantics = [#tpu.dimension_semantics<parallel>, #tpu.dimension_semantics<arbitrary>], iteration_bounds = array<i64: 1, 1>, scalar_prefetch = 0 : i64, scratch_operands = 3 : i64, tpu.core_type = #tpu.core_type<tc>, window_params = [{transform_indices = @transform_0, window_bounds = array<i64: 32, 256>}, {transform_indices = @transform_1, window_bounds = array<i64: 16, 32>}, {transform_indices = @transform_2, window_bounds = array<i64: 16, 32>}, {pipeline_mode = #tpu.pipeline_mode<synchronous>, transform_indices = @transform_3, window_bounds = array<i64: 16, 1>}, {transform_indices = @transform_4, window_bounds = array<i64: 16, 256>}]} {
    %c0_i32 = arith.constant 0 : i32
    %0 = arith.cmpi eq, %arg1, %c0_i32 : i32
    %1 = arith.extui %0 : i1 to i32
    %c0_i32_0 = arith.constant 0 : i32
    %2 = arith.cmpi ne, %1, %c0_i32_0 : i32
    scf.if %2 {
      %cst_179 = arith.constant 0.000000e+00 : f32
      %368 = vector.broadcast %cst_179 : f32 to vector<8x256xf32>
      %c0_180 = arith.constant 0 : index
      %c0_181 = arith.constant 0 : index
      %369 = vector.load %arg7[%c0_180, %c0_181] : memref<8x256xf32, #tpu.memory_space<vmem>>, vector<8x256xf32>
      tpu.vector_store %arg7[%c0_180, %c0_181], %368 {strides = array<i32>} : memref<8x256xf32, #tpu.memory_space<vmem>>, vector<8x256xf32>,
      %cst_182 = arith.constant 0.000000e+00 : f32
      %370 = vector.broadcast %cst_182 : f32 to vector<8x256xf32>
      %c0_183 = arith.constant 0 : index
      %c0_184 = arith.constant 0 : index
      %371 = vector.load %arg8[%c0_183, %c0_184] : memref<8x256xf32, #tpu.memory_space<vmem>>, vector<8x256xf32>
      tpu.vector_store %arg8[%c0_183, %c0_184], %370 {strides = array<i32>} : memref<8x256xf32, #tpu.memory_space<vmem>>, vector<8x256xf32>,
      %cst_185 = arith.constant 0.000000e+00 : f32
      %372 = vector.broadcast %cst_185 : f32 to vector<16x256xf32>
      %c0_186 = arith.constant 0 : index
      %c0_187 = arith.constant 0 : index
      %373 = vector.load %arg9[%c0_186, %c0_187] : memref<16x256xf32, #tpu.memory_space<vmem>>, vector<16x256xf32>
      tpu.vector_store %arg9[%c0_186, %c0_187], %372 {strides = array<i32>} : memref<16x256xf32, #tpu.memory_space<vmem>>, vector<16x256xf32>,
    } else {
    }
    %c0 = arith.constant 0 : index
    %c0_1 = arith.constant 0 : index
    %3 = vector.load %arg2[%c0, %c0_1] : memref<32x256xf32, #tpu.memory_space<vmem>>, vector<32x256xf32>
    %c0_2 = arith.constant 0 : index
    %c0_3 = arith.constant 0 : index
    %4 = vector.load %arg4[%c0_2, %c0_3] : memref<16x32xf32, #tpu.memory_space<vmem>>, vector<16x32xf32>
    %c0_4 = arith.constant 0 : index
    %c0_5 = arith.constant 0 : index
    %5 = vector.load %arg9[%c0_4, %c0_5] : memref<16x256xf32, #tpu.memory_space<vmem>>, vector<16x256xf32>
    %cst = arith.constant dense<0.000000e+00> : vector<16x256xf32>
    %6 = tpu.matmul %4, %3, %cst {dimension_numbers = #tpu.dot_dimension_numbers<[1], [0], [0], [1], [0, 0, 1, 1], [], []>} : vector<16x32xf32>, vector<32x256xf32>, vector<16x256xf32> -> vector<16x256xf32>
    %7 = arith.addf %5, %6 : vector<16x256xf32>
    %c0_6 = arith.constant 0 : index
    %c0_7 = arith.constant 0 : index
    %8 = vector.load %arg9[%c0_6, %c0_7] : memref<16x256xf32, #tpu.memory_space<vmem>>, vector<16x256xf32>
    tpu.vector_store %arg9[%c0_6, %c0_7], %7 {strides = array<i32>} : memref<16x256xf32, #tpu.memory_space<vmem>>, vector<16x256xf32>,
    %c0_8 = arith.constant 0 : index
    %c0_9 = arith.constant 0 : index
    %9 = vector.load %arg7[%c0_8, %c0_9] : memref<8x256xf32, #tpu.memory_space<vmem>>, vector<8x256xf32>
    %c0_10 = arith.constant 0 : index
    %c0_11 = arith.constant 0 : index
    %10 = vector.load %arg8[%c0_10, %c0_11] : memref<8x256xf32, #tpu.memory_space<vmem>>, vector<8x256xf32>
    %c0_12 = arith.constant 0 : index
    %c0_13 = arith.constant 0 : index
    %11 = vector.load %arg3[%c0_12, %c0_13] : memref<16x32xf32, #tpu.memory_space<vmem>>, vector<8x1xf32>
    %c8 = arith.constant 8 : index
    %c0_14 = arith.constant 0 : index
    %12 = vector.load %arg3[%c8, %c0_14] : memref<16x32xf32, #tpu.memory_space<vmem>>, vector<8x1xf32>
    %c0_15 = arith.constant 0 : index
    %c0_16 = arith.constant 0 : index
    %13 = vector.load %arg2[%c0_15, %c0_16] : memref<32x256xf32, #tpu.memory_space<vmem>>, vector<1x256xf32>
    %14 = vector.broadcast %11 : vector<8x1xf32> to vector<8x256xf32>
    %15 = arith.addf %9, %14 : vector<8x256xf32>
    %16 = vector.broadcast %13 : vector<1x256xf32> to vector<8x256xf32>
    %17 = arith.mulf %15, %16 : vector<8x256xf32>
    %18 = vector.broadcast %13 : vector<1x256xf32> to vector<8x256xf32>
    %19 = arith.addf %10, %18 : vector<8x256xf32>
    %20 = vector.broadcast %12 : vector<8x1xf32> to vector<8x256xf32>
    %21 = arith.mulf %19, %20 : vector<8x256xf32>
    %c0_17 = arith.constant 0 : index
    %c1 = arith.constant 1 : index
    %22 = vector.load %arg3[%c0_17, %c1] : memref<16x32xf32, #tpu.memory_space<vmem>>, vector<8x1xf32>
    %c8_18 = arith.constant 8 : index
    %c1_19 = arith.constant 1 : index
    %23 = vector.load %arg3[%c8_18, %c1_19] : memref<16x32xf32, #tpu.memory_space<vmem>>, vector<8x1xf32>
    %c1_20 = arith.constant 1 : index
    %c0_21 = arith.constant 0 : index
    %24 = vector.load %arg2[%c1_20, %c0_21] : memref<32x256xf32, #tpu.memory_space<vmem>>, vector<1x256xf32>
    %25 = vector.broadcast %24 : vector<1x256xf32> to vector<8x256xf32>
    %26 = arith.addf %17, %25 : vector<8x256xf32>
    %27 = vector.broadcast %22 : vector<8x1xf32> to vector<8x256xf32>
    %28 = arith.mulf %26, %27 : vector<8x256xf32>
    %29 = vector.broadcast %23 : vector<8x1xf32> to vector<8x256xf32>
    %30 = arith.addf %21, %29 : vector<8x256xf32>
    %31 = vector.broadcast %24 : vector<1x256xf32> to vector<8x256xf32>
    %32 = arith.mulf %30, %31 : vector<8x256xf32>
    %c0_22 = arith.constant 0 : index
    %c2 = arith.constant 2 : index
    %33 = vector.load %arg3[%c0_22, %c2] : memref<16x32xf32, #tpu.memory_space<vmem>>, vector<8x1xf32>
    %c8_23 = arith.constant 8 : index
    %c2_24 = arith.constant 2 : index
    %34 = vector.load %arg3[%c8_23, %c2_24] : memref<16x32xf32, #tpu.memory_space<vmem>>, vector<8x1xf32>
    %c2_25 = arith.constant 2 : index
    %c0_26 = arith.constant 0 : index
    %35 = vector.load %arg2[%c2_25, %c0_26] : memref<32x256xf32, #tpu.memory_space<vmem>>, vector<1x256xf32>
    %36 = vector.broadcast %33 : vector<8x1xf32> to vector<8x256xf32>
    %37 = arith.addf %28, %36 : vector<8x256xf32>
    %38 = vector.broadcast %35 : vector<1x256xf32> to vector<8x256xf32>
    %39 = arith.mulf %37, %38 : vector<8x256xf32>
    %40 = vector.broadcast %35 : vector<1x256xf32> to vector<8x256xf32>
    %41 = arith.addf %32, %40 : vector<8x256xf32>
    %42 = vector.broadcast %34 : vector<8x1xf32> to vector<8x256xf32>
    %43 = arith.mulf %41, %42 : vector<8x256xf32>
    %c0_27 = arith.constant 0 : index
    %c3 = arith.constant 3 : index
    %44 = vector.load %arg3[%c0_27, %c3] : memref<16x32xf32, #tpu.memory_space<vmem>>, vector<8x1xf32>
    %c8_28 = arith.constant 8 : index
    %c3_29 = arith.constant 3 : index
    %45 = vector.load %arg3[%c8_28, %c3_29] : memref<16x32xf32, #tpu.memory_space<vmem>>, vector<8x1xf32>
    %c3_30 = arith.constant 3 : index
    %c0_31 = arith.constant 0 : index
    %46 = vector.load %arg2[%c3_30, %c0_31] : memref<32x256xf32, #tpu.memory_space<vmem>>, vector<1x256xf32>
    %47 = vector.broadcast %46 : vector<1x256xf32> to vector<8x256xf32>
    %48 = arith.addf %39, %47 : vector<8x256xf32>
    %49 = vector.broadcast %44 : vector<8x1xf32> to vector<8x256xf32>
    %50 = arith.mulf %48, %49 : vector<8x256xf32>
    %51 = vector.broadcast %45 : vector<8x1xf32> to vector<8x256xf32>
    %52 = arith.addf %43, %51 : vector<8x256xf32>
    %53 = vector.broadcast %46 : vector<1x256xf32> to vector<8x256xf32>
    %54 = arith.mulf %52, %53 : vector<8x256xf32>
    %c0_32 = arith.constant 0 : index
    %c4 = arith.constant 4 : index
    %55 = vector.load %arg3[%c0_32, %c4] : memref<16x32xf32, #tpu.memory_space<vmem>>, vector<8x1xf32>
    %c8_33 = arith.constant 8 : index
    %c4_34 = arith.constant 4 : index
    %56 = vector.load %arg3[%c8_33, %c4_34] : memref<16x32xf32, #tpu.memory_space<vmem>>, vector<8x1xf32>
    %c4_35 = arith.constant 4 : index
    %c0_36 = arith.constant 0 : index
    %57 = vector.load %arg2[%c4_35, %c0_36] : memref<32x256xf32, #tpu.memory_space<vmem>>, vector<1x256xf32>
    %58 = vector.broadcast %55 : vector<8x1xf32> to vector<8x256xf32>
    %59 = arith.addf %50, %58 : vector<8x256xf32>
    %60 = vector.broadcast %57 : vector<1x256xf32> to vector<8x256xf32>
    %61 = arith.mulf %59, %60 : vector<8x256xf32>
    %62 = vector.broadcast %57 : vector<1x256xf32> to vector<8x256xf32>
    %63 = arith.addf %54, %62 : vector<8x256xf32>
    %64 = vector.broadcast %56 : vector<8x1xf32> to vector<8x256xf32>
    %65 = arith.mulf %63, %64 : vector<8x256xf32>
    %c0_37 = arith.constant 0 : index
    %c5 = arith.constant 5 : index
    %66 = vector.load %arg3[%c0_37, %c5] : memref<16x32xf32, #tpu.memory_space<vmem>>, vector<8x1xf32>
    %c8_38 = arith.constant 8 : index
    %c5_39 = arith.constant 5 : index
    %67 = vector.load %arg3[%c8_38, %c5_39] : memref<16x32xf32, #tpu.memory_space<vmem>>, vector<8x1xf32>
    %c5_40 = arith.constant 5 : index
    %c0_41 = arith.constant 0 : index
    %68 = vector.load %arg2[%c5_40, %c0_41] : memref<32x256xf32, #tpu.memory_space<vmem>>, vector<1x256xf32>
    %69 = vector.broadcast %68 : vector<1x256xf32> to vector<8x256xf32>
    %70 = arith.addf %61, %69 : vector<8x256xf32>
    %71 = vector.broadcast %66 : vector<8x1xf32> to vector<8x256xf32>
    %72 = arith.mulf %70, %71 : vector<8x256xf32>
    %73 = vector.broadcast %67 : vector<8x1xf32> to vector<8x256xf32>
    %74 = arith.addf %65, %73 : vector<8x256xf32>
    %75 = vector.broadcast %68 : vector<1x256xf32> to vector<8x256xf32>
    %76 = arith.mulf %74, %75 : vector<8x256xf32>
    %c0_42 = arith.constant 0 : index
    %c6 = arith.constant 6 : index
    %77 = vector.load %arg3[%c0_42, %c6] : memref<16x32xf32, #tpu.memory_space<vmem>>, vector<8x1xf32>
    %c8_43 = arith.constant 8 : index
    %c6_44 = arith.constant 6 : index
    %78 = vector.load %arg3[%c8_43, %c6_44] : memref<16x32xf32, #tpu.memory_space<vmem>>, vector<8x1xf32>
    %c6_45 = arith.constant 6 : index
    %c0_46 = arith.constant 0 : index
    %79 = vector.load %arg2[%c6_45, %c0_46] : memref<32x256xf32, #tpu.memory_space<vmem>>, vector<1x256xf32>
    %80 = vector.broadcast %77 : vector<8x1xf32> to vector<8x256xf32>
    %81 = arith.addf %72, %80 : vector<8x256xf32>
    %82 = vector.broadcast %79 : vector<1x256xf32> to vector<8x256xf32>
    %83 = arith.mulf %81, %82 : vector<8x256xf32>
    %84 = vector.broadcast %79 : vector<1x256xf32> to vector<8x256xf32>
    %85 = arith.addf %76, %84 : vector<8x256xf32>
    %86 = vector.broadcast %78 : vector<8x1xf32> to vector<8x256xf32>
    %87 = arith.mulf %85, %86 : vector<8x256xf32>
    %c0_47 = arith.constant 0 : index
    %c7 = arith.constant 7 : index
    %88 = vector.load %arg3[%c0_47, %c7] : memref<16x32xf32, #tpu.memory_space<vmem>>, vector<8x1xf32>
    %c8_48 = arith.constant 8 : index
    %c7_49 = arith.constant 7 : index
    %89 = vector.load %arg3[%c8_48, %c7_49] : memref<16x32xf32, #tpu.memory_space<vmem>>, vector<8x1xf32>
    %c7_50 = arith.constant 7 : index
    %c0_51 = arith.constant 0 : index
    %90 = vector.load %arg2[%c7_50, %c0_51] : memref<32x256xf32, #tpu.memory_space<vmem>>, vector<1x256xf32>
    %91 = vector.broadcast %90 : vector<1x256xf32> to vector<8x256xf32>
    %92 = arith.addf %83, %91 : vector<8x256xf32>
    %93 = vector.broadcast %88 : vector<8x1xf32> to vector<8x256xf32>
    %94 = arith.mulf %92, %93 : vector<8x256xf32>
    %95 = vector.broadcast %89 : vector<8x1xf32> to vector<8x256xf32>
    %96 = arith.addf %87, %95 : vector<8x256xf32>
    %97 = vector.broadcast %90 : vector<1x256xf32> to vector<8x256xf32>
    %98 = arith.mulf %96, %97 : vector<8x256xf32>
    %c0_52 = arith.constant 0 : index
    %c8_53 = arith.constant 8 : index
    %99 = vector.load %arg3[%c0_52, %c8_53] : memref<16x32xf32, #tpu.memory_space<vmem>>, vector<8x1xf32>
    %c8_54 = arith.constant 8 : index
    %c8_55 = arith.constant 8 : index
    %100 = vector.load %arg3[%c8_54, %c8_55] : memref<16x32xf32, #tpu.memory_space<vmem>>, vector<8x1xf32>
    %c8_56 = arith.constant 8 : index
    %c0_57 = arith.constant 0 : index
    %101 = vector.load %arg2[%c8_56, %c0_57] : memref<32x256xf32, #tpu.memory_space<vmem>>, vector<1x256xf32>
    %102 = vector.broadcast %99 : vector<8x1xf32> to vector<8x256xf32>
    %103 = arith.addf %94, %102 : vector<8x256xf32>
    %104 = vector.broadcast %101 : vector<1x256xf32> to vector<8x256xf32>
    %105 = arith.mulf %103, %104 : vector<8x256xf32>
    %106 = vector.broadcast %101 : vector<1x256xf32> to vector<8x256xf32>
    %107 = arith.addf %98, %106 : vector<8x256xf32>
    %108 = vector.broadcast %100 : vector<8x1xf32> to vector<8x256xf32>
    %109 = arith.mulf %107, %108 : vector<8x256xf32>
    %c0_58 = arith.constant 0 : index
    %c9 = arith.constant 9 : index
    %110 = vector.load %arg3[%c0_58, %c9] : memref<16x32xf32, #tpu.memory_space<vmem>>, vector<8x1xf32>
    %c8_59 = arith.constant 8 : index
    %c9_60 = arith.constant 9 : index
    %111 = vector.load %arg3[%c8_59, %c9_60] : memref<16x32xf32, #tpu.memory_space<vmem>>, vector<8x1xf32>
    %c9_61 = arith.constant 9 : index
    %c0_62 = arith.constant 0 : index
    %112 = vector.load %arg2[%c9_61, %c0_62] : memref<32x256xf32, #tpu.memory_space<vmem>>, vector<1x256xf32>
    %113 = vector.broadcast %112 : vector<1x256xf32> to vector<8x256xf32>
    %114 = arith.addf %105, %113 : vector<8x256xf32>
    %115 = vector.broadcast %110 : vector<8x1xf32> to vector<8x256xf32>
    %116 = arith.mulf %114, %115 : vector<8x256xf32>
    %117 = vector.broadcast %111 : vector<8x1xf32> to vector<8x256xf32>
    %118 = arith.addf %109, %117 : vector<8x256xf32>
    %119 = vector.broadcast %112 : vector<1x256xf32> to vector<8x256xf32>
    %120 = arith.mulf %118, %119 : vector<8x256xf32>
    %c0_63 = arith.constant 0 : index
    %c10 = arith.constant 10 : index
    %121 = vector.load %arg3[%c0_63, %c10] : memref<16x32xf32, #tpu.memory_space<vmem>>, vector<8x1xf32>
    %c8_64 = arith.constant 8 : index
    %c10_65 = arith.constant 10 : index
    %122 = vector.load %arg3[%c8_64, %c10_65] : memref<16x32xf32, #tpu.memory_space<vmem>>, vector<8x1xf32>
    %c10_66 = arith.constant 10 : index
    %c0_67 = arith.constant 0 : index
    %123 = vector.load %arg2[%c10_66, %c0_67] : memref<32x256xf32, #tpu.memory_space<vmem>>, vector<1x256xf32>
    %124 = vector.broadcast %121 : vector<8x1xf32> to vector<8x256xf32>
    %125 = arith.addf %116, %124 : vector<8x256xf32>
    %126 = vector.broadcast %123 : vector<1x256xf32> to vector<8x256xf32>
    %127 = arith.mulf %125, %126 : vector<8x256xf32>
    %128 = vector.broadcast %123 : vector<1x256xf32> to vector<8x256xf32>
    %129 = arith.addf %120, %128 : vector<8x256xf32>
    %130 = vector.broadcast %122 : vector<8x1xf32> to vector<8x256xf32>
    %131 = arith.mulf %129, %130 : vector<8x256xf32>
    %c0_68 = arith.constant 0 : index
    %c11 = arith.constant 11 : index
    %132 = vector.load %arg3[%c0_68, %c11] : memref<16x32xf32, #tpu.memory_space<vmem>>, vector<8x1xf32>
    %c8_69 = arith.constant 8 : index
    %c11_70 = arith.constant 11 : index
    %133 = vector.load %arg3[%c8_69, %c11_70] : memref<16x32xf32, #tpu.memory_space<vmem>>, vector<8x1xf32>
    %c11_71 = arith.constant 11 : index
    %c0_72 = arith.constant 0 : index
    %134 = vector.load %arg2[%c11_71, %c0_72] : memref<32x256xf32, #tpu.memory_space<vmem>>, vector<1x256xf32>
    %135 = vector.broadcast %134 : vector<1x256xf32> to vector<8x256xf32>
    %136 = arith.addf %127, %135 : vector<8x256xf32>
    %137 = vector.broadcast %132 : vector<8x1xf32> to vector<8x256xf32>
    %138 = arith.mulf %136, %137 : vector<8x256xf32>
    %139 = vector.broadcast %133 : vector<8x1xf32> to vector<8x256xf32>
    %140 = arith.addf %131, %139 : vector<8x256xf32>
    %141 = vector.broadcast %134 : vector<1x256xf32> to vector<8x256xf32>
    %142 = arith.mulf %140, %141 : vector<8x256xf32>
    %c0_73 = arith.constant 0 : index
    %c12 = arith.constant 12 : index
    %143 = vector.load %arg3[%c0_73, %c12] : memref<16x32xf32, #tpu.memory_space<vmem>>, vector<8x1xf32>
    %c8_74 = arith.constant 8 : index
    %c12_75 = arith.constant 12 : index
    %144 = vector.load %arg3[%c8_74, %c12_75] : memref<16x32xf32, #tpu.memory_space<vmem>>, vector<8x1xf32>
    %c12_76 = arith.constant 12 : index
    %c0_77 = arith.constant 0 : index
    %145 = vector.load %arg2[%c12_76, %c0_77] : memref<32x256xf32, #tpu.memory_space<vmem>>, vector<1x256xf32>
    %146 = vector.broadcast %143 : vector<8x1xf32> to vector<8x256xf32>
    %147 = arith.addf %138, %146 : vector<8x256xf32>
    %148 = vector.broadcast %145 : vector<1x256xf32> to vector<8x256xf32>
    %149 = arith.mulf %147, %148 : vector<8x256xf32>
    %150 = vector.broadcast %145 : vector<1x256xf32> to vector<8x256xf32>
    %151 = arith.addf %142, %150 : vector<8x256xf32>
    %152 = vector.broadcast %144 : vector<8x1xf32> to vector<8x256xf32>
    %153 = arith.mulf %151, %152 : vector<8x256xf32>
    %c0_78 = arith.constant 0 : index
    %c13 = arith.constant 13 : index
    %154 = vector.load %arg3[%c0_78, %c13] : memref<16x32xf32, #tpu.memory_space<vmem>>, vector<8x1xf32>
    %c8_79 = arith.constant 8 : index
    %c13_80 = arith.constant 13 : index
    %155 = vector.load %arg3[%c8_79, %c13_80] : memref<16x32xf32, #tpu.memory_space<vmem>>, vector<8x1xf32>
    %c13_81 = arith.constant 13 : index
    %c0_82 = arith.constant 0 : index
    %156 = vector.load %arg2[%c13_81, %c0_82] : memref<32x256xf32, #tpu.memory_space<vmem>>, vector<1x256xf32>
    %157 = vector.broadcast %156 : vector<1x256xf32> to vector<8x256xf32>
    %158 = arith.addf %149, %157 : vector<8x256xf32>
    %159 = vector.broadcast %154 : vector<8x1xf32> to vector<8x256xf32>
    %160 = arith.mulf %158, %159 : vector<8x256xf32>
    %161 = vector.broadcast %155 : vector<8x1xf32> to vector<8x256xf32>
    %162 = arith.addf %153, %161 : vector<8x256xf32>
    %163 = vector.broadcast %156 : vector<1x256xf32> to vector<8x256xf32>
    %164 = arith.mulf %162, %163 : vector<8x256xf32>
    %c0_83 = arith.constant 0 : index
    %c14 = arith.constant 14 : index
    %165 = vector.load %arg3[%c0_83, %c14] : memref<16x32xf32, #tpu.memory_space<vmem>>, vector<8x1xf32>
    %c8_84 = arith.constant 8 : index
    %c14_85 = arith.constant 14 : index
    %166 = vector.load %arg3[%c8_84, %c14_85] : memref<16x32xf32, #tpu.memory_space<vmem>>, vector<8x1xf32>
    %c14_86 = arith.constant 14 : index
    %c0_87 = arith.constant 0 : index
    %167 = vector.load %arg2[%c14_86, %c0_87] : memref<32x256xf32, #tpu.memory_space<vmem>>, vector<1x256xf32>
    %168 = vector.broadcast %165 : vector<8x1xf32> to vector<8x256xf32>
    %169 = arith.addf %160, %168 : vector<8x256xf32>
    %170 = vector.broadcast %167 : vector<1x256xf32> to vector<8x256xf32>
    %171 = arith.mulf %169, %170 : vector<8x256xf32>
    %172 = vector.broadcast %167 : vector<1x256xf32> to vector<8x256xf32>
    %173 = arith.addf %164, %172 : vector<8x256xf32>
    %174 = vector.broadcast %166 : vector<8x1xf32> to vector<8x256xf32>
    %175 = arith.mulf %173, %174 : vector<8x256xf32>
    %c0_88 = arith.constant 0 : index
    %c15 = arith.constant 15 : index
    %176 = vector.load %arg3[%c0_88, %c15] : memref<16x32xf32, #tpu.memory_space<vmem>>, vector<8x1xf32>
    %c8_89 = arith.constant 8 : index
    %c15_90 = arith.constant 15 : index
    %177 = vector.load %arg3[%c8_89, %c15_90] : memref<16x32xf32, #tpu.memory_space<vmem>>, vector<8x1xf32>
    %c15_91 = arith.constant 15 : index
    %c0_92 = arith.constant 0 : index
    %178 = vector.load %arg2[%c15_91, %c0_92] : memref<32x256xf32, #tpu.memory_space<vmem>>, vector<1x256xf32>
    %179 = vector.broadcast %178 : vector<1x256xf32> to vector<8x256xf32>
    %180 = arith.addf %171, %179 : vector<8x256xf32>
    %181 = vector.broadcast %176 : vector<8x1xf32> to vector<8x256xf32>
    %182 = arith.mulf %180, %181 : vector<8x256xf32>
    %183 = vector.broadcast %177 : vector<8x1xf32> to vector<8x256xf32>
    %184 = arith.addf %175, %183 : vector<8x256xf32>
    %185 = vector.broadcast %178 : vector<1x256xf32> to vector<8x256xf32>
    %186 = arith.mulf %184, %185 : vector<8x256xf32>
    %c0_93 = arith.constant 0 : index
    %c16 = arith.constant 16 : index
    %187 = vector.load %arg3[%c0_93, %c16] : memref<16x32xf32, #tpu.memory_space<vmem>>, vector<8x1xf32>
    %c8_94 = arith.constant 8 : index
    %c16_95 = arith.constant 16 : index
    %188 = vector.load %arg3[%c8_94, %c16_95] : memref<16x32xf32, #tpu.memory_space<vmem>>, vector<8x1xf32>
    %c16_96 = arith.constant 16 : index
    %c0_97 = arith.constant 0 : index
    %189 = vector.load %arg2[%c16_96, %c0_97] : memref<32x256xf32, #tpu.memory_space<vmem>>, vector<1x256xf32>
    %190 = vector.broadcast %187 : vector<8x1xf32> to vector<8x256xf32>
    %191 = arith.addf %182, %190 : vector<8x256xf32>
    %192 = vector.broadcast %189 : vector<1x256xf32> to vector<8x256xf32>
    %193 = arith.mulf %191, %192 : vector<8x256xf32>
    %194 = vector.broadcast %189 : vector<1x256xf32> to vector<8x256xf32>
    %195 = arith.addf %186, %194 : vector<8x256xf32>
    %196 = vector.broadcast %188 : vector<8x1xf32> to vector<8x256xf32>
    %197 = arith.mulf %195, %196 : vector<8x256xf32>
    %c0_98 = arith.constant 0 : index
    %c17 = arith.constant 17 : index
    %198 = vector.load %arg3[%c0_98, %c17] : memref<16x32xf32, #tpu.memory_space<vmem>>, vector<8x1xf32>
    %c8_99 = arith.constant 8 : index
    %c17_100 = arith.constant 17 : index
    %199 = vector.load %arg3[%c8_99, %c17_100] : memref<16x32xf32, #tpu.memory_space<vmem>>, vector<8x1xf32>
    %c17_101 = arith.constant 17 : index
    %c0_102 = arith.constant 0 : index
    %200 = vector.load %arg2[%c17_101, %c0_102] : memref<32x256xf32, #tpu.memory_space<vmem>>, vector<1x256xf32>
    %201 = vector.broadcast %200 : vector<1x256xf32> to vector<8x256xf32>
    %202 = arith.addf %193, %201 : vector<8x256xf32>
    %203 = vector.broadcast %198 : vector<8x1xf32> to vector<8x256xf32>
    %204 = arith.mulf %202, %203 : vector<8x256xf32>
    %205 = vector.broadcast %199 : vector<8x1xf32> to vector<8x256xf32>
    %206 = arith.addf %197, %205 : vector<8x256xf32>
    %207 = vector.broadcast %200 : vector<1x256xf32> to vector<8x256xf32>
    %208 = arith.mulf %206, %207 : vector<8x256xf32>
    %c0_103 = arith.constant 0 : index
    %c18 = arith.constant 18 : index
    %209 = vector.load %arg3[%c0_103, %c18] : memref<16x32xf32, #tpu.memory_space<vmem>>, vector<8x1xf32>
    %c8_104 = arith.constant 8 : index
    %c18_105 = arith.constant 18 : index
    %210 = vector.load %arg3[%c8_104, %c18_105] : memref<16x32xf32, #tpu.memory_space<vmem>>, vector<8x1xf32>
    %c18_106 = arith.constant 18 : index
    %c0_107 = arith.constant 0 : index
    %211 = vector.load %arg2[%c18_106, %c0_107] : memref<32x256xf32, #tpu.memory_space<vmem>>, vector<1x256xf32>
    %212 = vector.broadcast %209 : vector<8x1xf32> to vector<8x256xf32>
    %213 = arith.addf %204, %212 : vector<8x256xf32>
    %214 = vector.broadcast %211 : vector<1x256xf32> to vector<8x256xf32>
    %215 = arith.mulf %213, %214 : vector<8x256xf32>
    %216 = vector.broadcast %211 : vector<1x256xf32> to vector<8x256xf32>
    %217 = arith.addf %208, %216 : vector<8x256xf32>
    %218 = vector.broadcast %210 : vector<8x1xf32> to vector<8x256xf32>
    %219 = arith.mulf %217, %218 : vector<8x256xf32>
    %c0_108 = arith.constant 0 : index
    %c19 = arith.constant 19 : index
    %220 = vector.load %arg3[%c0_108, %c19] : memref<16x32xf32, #tpu.memory_space<vmem>>, vector<8x1xf32>
    %c8_109 = arith.constant 8 : index
    %c19_110 = arith.constant 19 : index
    %221 = vector.load %arg3[%c8_109, %c19_110] : memref<16x32xf32, #tpu.memory_space<vmem>>, vector<8x1xf32>
    %c19_111 = arith.constant 19 : index
    %c0_112 = arith.constant 0 : index
    %222 = vector.load %arg2[%c19_111, %c0_112] : memref<32x256xf32, #tpu.memory_space<vmem>>, vector<1x256xf32>
    %223 = vector.broadcast %222 : vector<1x256xf32> to vector<8x256xf32>
    %224 = arith.addf %215, %223 : vector<8x256xf32>
    %225 = vector.broadcast %220 : vector<8x1xf32> to vector<8x256xf32>
    %226 = arith.mulf %224, %225 : vector<8x256xf32>
    %227 = vector.broadcast %221 : vector<8x1xf32> to vector<8x256xf32>
    %228 = arith.addf %219, %227 : vector<8x256xf32>
    %229 = vector.broadcast %222 : vector<1x256xf32> to vector<8x256xf32>
    %230 = arith.mulf %228, %229 : vector<8x256xf32>
    %c0_113 = arith.constant 0 : index
    %c20 = arith.constant 20 : index
    %231 = vector.load %arg3[%c0_113, %c20] : memref<16x32xf32, #tpu.memory_space<vmem>>, vector<8x1xf32>
    %c8_114 = arith.constant 8 : index
    %c20_115 = arith.constant 20 : index
    %232 = vector.load %arg3[%c8_114, %c20_115] : memref<16x32xf32, #tpu.memory_space<vmem>>, vector<8x1xf32>
    %c20_116 = arith.constant 20 : index
    %c0_117 = arith.constant 0 : index
    %233 = vector.load %arg2[%c20_116, %c0_117] : memref<32x256xf32, #tpu.memory_space<vmem>>, vector<1x256xf32>
    %234 = vector.broadcast %231 : vector<8x1xf32> to vector<8x256xf32>
    %235 = arith.addf %226, %234 : vector<8x256xf32>
    %236 = vector.broadcast %233 : vector<1x256xf32> to vector<8x256xf32>
    %237 = arith.mulf %235, %236 : vector<8x256xf32>
    %238 = vector.broadcast %233 : vector<1x256xf32> to vector<8x256xf32>
    %239 = arith.addf %230, %238 : vector<8x256xf32>
    %240 = vector.broadcast %232 : vector<8x1xf32> to vector<8x256xf32>
    %241 = arith.mulf %239, %240 : vector<8x256xf32>
    %c0_118 = arith.constant 0 : index
    %c21 = arith.constant 21 : index
    %242 = vector.load %arg3[%c0_118, %c21] : memref<16x32xf32, #tpu.memory_space<vmem>>, vector<8x1xf32>
    %c8_119 = arith.constant 8 : index
    %c21_120 = arith.constant 21 : index
    %243 = vector.load %arg3[%c8_119, %c21_120] : memref<16x32xf32, #tpu.memory_space<vmem>>, vector<8x1xf32>
    %c21_121 = arith.constant 21 : index
    %c0_122 = arith.constant 0 : index
    %244 = vector.load %arg2[%c21_121, %c0_122] : memref<32x256xf32, #tpu.memory_space<vmem>>, vector<1x256xf32>
    %245 = vector.broadcast %244 : vector<1x256xf32> to vector<8x256xf32>
    %246 = arith.addf %237, %245 : vector<8x256xf32>
    %247 = vector.broadcast %242 : vector<8x1xf32> to vector<8x256xf32>
    %248 = arith.mulf %246, %247 : vector<8x256xf32>
    %249 = vector.broadcast %243 : vector<8x1xf32> to vector<8x256xf32>
    %250 = arith.addf %241, %249 : vector<8x256xf32>
    %251 = vector.broadcast %244 : vector<1x256xf32> to vector<8x256xf32>
    %252 = arith.mulf %250, %251 : vector<8x256xf32>
    %c0_123 = arith.constant 0 : index
    %c22 = arith.constant 22 : index
    %253 = vector.load %arg3[%c0_123, %c22] : memref<16x32xf32, #tpu.memory_space<vmem>>, vector<8x1xf32>
    %c8_124 = arith.constant 8 : index
    %c22_125 = arith.constant 22 : index
    %254 = vector.load %arg3[%c8_124, %c22_125] : memref<16x32xf32, #tpu.memory_space<vmem>>, vector<8x1xf32>
    %c22_126 = arith.constant 22 : index
    %c0_127 = arith.constant 0 : index
    %255 = vector.load %arg2[%c22_126, %c0_127] : memref<32x256xf32, #tpu.memory_space<vmem>>, vector<1x256xf32>
    %256 = vector.broadcast %253 : vector<8x1xf32> to vector<8x256xf32>
    %257 = arith.addf %248, %256 : vector<8x256xf32>
    %258 = vector.broadcast %255 : vector<1x256xf32> to vector<8x256xf32>
    %259 = arith.mulf %257, %258 : vector<8x256xf32>
    %260 = vector.broadcast %255 : vector<1x256xf32> to vector<8x256xf32>
    %261 = arith.addf %252, %260 : vector<8x256xf32>
    %262 = vector.broadcast %254 : vector<8x1xf32> to vector<8x256xf32>
    %263 = arith.mulf %261, %262 : vector<8x256xf32>
    %c0_128 = arith.constant 0 : index
    %c23 = arith.constant 23 : index
    %264 = vector.load %arg3[%c0_128, %c23] : memref<16x32xf32, #tpu.memory_space<vmem>>, vector<8x1xf32>
    %c8_129 = arith.constant 8 : index
    %c23_130 = arith.constant 23 : index
    %265 = vector.load %arg3[%c8_129, %c23_130] : memref<16x32xf32, #tpu.memory_space<vmem>>, vector<8x1xf32>
    %c23_131 = arith.constant 23 : index
    %c0_132 = arith.constant 0 : index
    %266 = vector.load %arg2[%c23_131, %c0_132] : memref<32x256xf32, #tpu.memory_space<vmem>>, vector<1x256xf32>
    %267 = vector.broadcast %266 : vector<1x256xf32> to vector<8x256xf32>
    %268 = arith.addf %259, %267 : vector<8x256xf32>
    %269 = vector.broadcast %264 : vector<8x1xf32> to vector<8x256xf32>
    %270 = arith.mulf %268, %269 : vector<8x256xf32>
    %271 = vector.broadcast %265 : vector<8x1xf32> to vector<8x256xf32>
    %272 = arith.addf %263, %271 : vector<8x256xf32>
    %273 = vector.broadcast %266 : vector<1x256xf32> to vector<8x256xf32>
    %274 = arith.mulf %272, %273 : vector<8x256xf32>
    %c0_133 = arith.constant 0 : index
    %c24 = arith.constant 24 : index
    %275 = vector.load %arg3[%c0_133, %c24] : memref<16x32xf32, #tpu.memory_space<vmem>>, vector<8x1xf32>
    %c8_134 = arith.constant 8 : index
    %c24_135 = arith.constant 24 : index
    %276 = vector.load %arg3[%c8_134, %c24_135] : memref<16x32xf32, #tpu.memory_space<vmem>>, vector<8x1xf32>
    %c24_136 = arith.constant 24 : index
    %c0_137 = arith.constant 0 : index
    %277 = vector.load %arg2[%c24_136, %c0_137] : memref<32x256xf32, #tpu.memory_space<vmem>>, vector<1x256xf32>
    %278 = vector.broadcast %275 : vector<8x1xf32> to vector<8x256xf32>
    %279 = arith.addf %270, %278 : vector<8x256xf32>
    %280 = vector.broadcast %277 : vector<1x256xf32> to vector<8x256xf32>
    %281 = arith.mulf %279, %280 : vector<8x256xf32>
    %282 = vector.broadcast %277 : vector<1x256xf32> to vector<8x256xf32>
    %283 = arith.addf %274, %282 : vector<8x256xf32>
    %284 = vector.broadcast %276 : vector<8x1xf32> to vector<8x256xf32>
    %285 = arith.mulf %283, %284 : vector<8x256xf32>
    %c0_138 = arith.constant 0 : index
    %c25 = arith.constant 25 : index
    %286 = vector.load %arg3[%c0_138, %c25] : memref<16x32xf32, #tpu.memory_space<vmem>>, vector<8x1xf32>
    %c8_139 = arith.constant 8 : index
    %c25_140 = arith.constant 25 : index
    %287 = vector.load %arg3[%c8_139, %c25_140] : memref<16x32xf32, #tpu.memory_space<vmem>>, vector<8x1xf32>
    %c25_141 = arith.constant 25 : index
    %c0_142 = arith.constant 0 : index
    %288 = vector.load %arg2[%c25_141, %c0_142] : memref<32x256xf32, #tpu.memory_space<vmem>>, vector<1x256xf32>
    %289 = vector.broadcast %288 : vector<1x256xf32> to vector<8x256xf32>
    %290 = arith.addf %281, %289 : vector<8x256xf32>
    %291 = vector.broadcast %286 : vector<8x1xf32> to vector<8x256xf32>
    %292 = arith.mulf %290, %291 : vector<8x256xf32>
    %293 = vector.broadcast %287 : vector<8x1xf32> to vector<8x256xf32>
    %294 = arith.addf %285, %293 : vector<8x256xf32>
    %295 = vector.broadcast %288 : vector<1x256xf32> to vector<8x256xf32>
    %296 = arith.mulf %294, %295 : vector<8x256xf32>
    %c0_143 = arith.constant 0 : index
    %c26 = arith.constant 26 : index
    %297 = vector.load %arg3[%c0_143, %c26] : memref<16x32xf32, #tpu.memory_space<vmem>>, vector<8x1xf32>
    %c8_144 = arith.constant 8 : index
    %c26_145 = arith.constant 26 : index
    %298 = vector.load %arg3[%c8_144, %c26_145] : memref<16x32xf32, #tpu.memory_space<vmem>>, vector<8x1xf32>
    %c26_146 = arith.constant 26 : index
    %c0_147 = arith.constant 0 : index
    %299 = vector.load %arg2[%c26_146, %c0_147] : memref<32x256xf32, #tpu.memory_space<vmem>>, vector<1x256xf32>
    %300 = vector.broadcast %297 : vector<8x1xf32> to vector<8x256xf32>
    %301 = arith.addf %292, %300 : vector<8x256xf32>
    %302 = vector.broadcast %299 : vector<1x256xf32> to vector<8x256xf32>
    %303 = arith.mulf %301, %302 : vector<8x256xf32>
    %304 = vector.broadcast %299 : vector<1x256xf32> to vector<8x256xf32>
    %305 = arith.addf %296, %304 : vector<8x256xf32>
    %306 = vector.broadcast %298 : vector<8x1xf32> to vector<8x256xf32>
    %307 = arith.mulf %305, %306 : vector<8x256xf32>
    %c0_148 = arith.constant 0 : index
    %c27 = arith.constant 27 : index
    %308 = vector.load %arg3[%c0_148, %c27] : memref<16x32xf32, #tpu.memory_space<vmem>>, vector<8x1xf32>
    %c8_149 = arith.constant 8 : index
    %c27_150 = arith.constant 27 : index
    %309 = vector.load %arg3[%c8_149, %c27_150] : memref<16x32xf32, #tpu.memory_space<vmem>>, vector<8x1xf32>
    %c27_151 = arith.constant 27 : index
    %c0_152 = arith.constant 0 : index
    %310 = vector.load %arg2[%c27_151, %c0_152] : memref<32x256xf32, #tpu.memory_space<vmem>>, vector<1x256xf32>
    %311 = vector.broadcast %310 : vector<1x256xf32> to vector<8x256xf32>
    %312 = arith.addf %303, %311 : vector<8x256xf32>
    %313 = vector.broadcast %308 : vector<8x1xf32> to vector<8x256xf32>
    %314 = arith.mulf %312, %313 : vector<8x256xf32>
    %315 = vector.broadcast %309 : vector<8x1xf32> to vector<8x256xf32>
    %316 = arith.addf %307, %315 : vector<8x256xf32>
    %317 = vector.broadcast %310 : vector<1x256xf32> to vector<8x256xf32>
    %318 = arith.mulf %316, %317 : vector<8x256xf32>
    %c0_153 = arith.constant 0 : index
    %c28 = arith.constant 28 : index
    %319 = vector.load %arg3[%c0_153, %c28] : memref<16x32xf32, #tpu.memory_space<vmem>>, vector<8x1xf32>
    %c8_154 = arith.constant 8 : index
    %c28_155 = arith.constant 28 : index
    %320 = vector.load %arg3[%c8_154, %c28_155] : memref<16x32xf32, #tpu.memory_space<vmem>>, vector<8x1xf32>
    %c28_156 = arith.constant 28 : index
    %c0_157 = arith.constant 0 : index
    %321 = vector.load %arg2[%c28_156, %c0_157] : memref<32x256xf32, #tpu.memory_space<vmem>>, vector<1x256xf32>
    %322 = vector.broadcast %319 : vector<8x1xf32> to vector<8x256xf32>
    %323 = arith.addf %314, %322 : vector<8x256xf32>
    %324 = vector.broadcast %321 : vector<1x256xf32> to vector<8x256xf32>
    %325 = arith.mulf %323, %324 : vector<8x256xf32>
    %326 = vector.broadcast %321 : vector<1x256xf32> to vector<8x256xf32>
    %327 = arith.addf %318, %326 : vector<8x256xf32>
    %328 = vector.broadcast %320 : vector<8x1xf32> to vector<8x256xf32>
    %329 = arith.mulf %327, %328 : vector<8x256xf32>
    %c0_158 = arith.constant 0 : index
    %c29 = arith.constant 29 : index
    %330 = vector.load %arg3[%c0_158, %c29] : memref<16x32xf32, #tpu.memory_space<vmem>>, vector<8x1xf32>
    %c8_159 = arith.constant 8 : index
    %c29_160 = arith.constant 29 : index
    %331 = vector.load %arg3[%c8_159, %c29_160] : memref<16x32xf32, #tpu.memory_space<vmem>>, vector<8x1xf32>
    %c29_161 = arith.constant 29 : index
    %c0_162 = arith.constant 0 : index
    %332 = vector.load %arg2[%c29_161, %c0_162] : memref<32x256xf32, #tpu.memory_space<vmem>>, vector<1x256xf32>
    %333 = vector.broadcast %332 : vector<1x256xf32> to vector<8x256xf32>
    %334 = arith.addf %325, %333 : vector<8x256xf32>
    %335 = vector.broadcast %330 : vector<8x1xf32> to vector<8x256xf32>
    %336 = arith.mulf %334, %335 : vector<8x256xf32>
    %337 = vector.broadcast %331 : vector<8x1xf32> to vector<8x256xf32>
    %338 = arith.addf %329, %337 : vector<8x256xf32>
    %339 = vector.broadcast %332 : vector<1x256xf32> to vector<8x256xf32>
    %340 = arith.mulf %338, %339 : vector<8x256xf32>
    %c0_163 = arith.constant 0 : index
    %c30 = arith.constant 30 : index
    %341 = vector.load %arg3[%c0_163, %c30] : memref<16x32xf32, #tpu.memory_space<vmem>>, vector<8x1xf32>
    %c8_164 = arith.constant 8 : index
    %c30_165 = arith.constant 30 : index
    %342 = vector.load %arg3[%c8_164, %c30_165] : memref<16x32xf32, #tpu.memory_space<vmem>>, vector<8x1xf32>
    %c30_166 = arith.constant 30 : index
    %c0_167 = arith.constant 0 : index
    %343 = vector.load %arg2[%c30_166, %c0_167] : memref<32x256xf32, #tpu.memory_space<vmem>>, vector<1x256xf32>
    %344 = vector.broadcast %341 : vector<8x1xf32> to vector<8x256xf32>
    %345 = arith.addf %336, %344 : vector<8x256xf32>
    %346 = vector.broadcast %343 : vector<1x256xf32> to vector<8x256xf32>
    %347 = arith.mulf %345, %346 : vector<8x256xf32>
    %348 = vector.broadcast %343 : vector<1x256xf32> to vector<8x256xf32>
    %349 = arith.addf %340, %348 : vector<8x256xf32>
    %350 = vector.broadcast %342 : vector<8x1xf32> to vector<8x256xf32>
    %351 = arith.mulf %349, %350 : vector<8x256xf32>
    %c0_168 = arith.constant 0 : index
    %c31 = arith.constant 31 : index
    %352 = vector.load %arg3[%c0_168, %c31] : memref<16x32xf32, #tpu.memory_space<vmem>>, vector<8x1xf32>
    %c8_169 = arith.constant 8 : index
    %c31_170 = arith.constant 31 : index
    %353 = vector.load %arg3[%c8_169, %c31_170] : memref<16x32xf32, #tpu.memory_space<vmem>>, vector<8x1xf32>
    %c31_171 = arith.constant 31 : index
    %c0_172 = arith.constant 0 : index
    %354 = vector.load %arg2[%c31_171, %c0_172] : memref<32x256xf32, #tpu.memory_space<vmem>>, vector<1x256xf32>
    %355 = vector.broadcast %354 : vector<1x256xf32> to vector<8x256xf32>
    %356 = arith.addf %347, %355 : vector<8x256xf32>
    %357 = vector.broadcast %352 : vector<8x1xf32> to vector<8x256xf32>
    %358 = arith.mulf %356, %357 : vector<8x256xf32>
    %359 = vector.broadcast %353 : vector<8x1xf32> to vector<8x256xf32>
    %360 = arith.addf %351, %359 : vector<8x256xf32>
    %361 = vector.broadcast %354 : vector<1x256xf32> to vector<8x256xf32>
    %362 = arith.mulf %360, %361 : vector<8x256xf32>
    %c0_173 = arith.constant 0 : index
    %c0_174 = arith.constant 0 : index
    %363 = vector.load %arg7[%c0_173, %c0_174] : memref<8x256xf32, #tpu.memory_space<vmem>>, vector<8x256xf32>
    tpu.vector_store %arg7[%c0_173, %c0_174], %358 {strides = array<i32>} : memref<8x256xf32, #tpu.memory_space<vmem>>, vector<8x256xf32>,
    %c0_175 = arith.constant 0 : index
    %c0_176 = arith.constant 0 : index
    %364 = vector.load %arg8[%c0_175, %c0_176] : memref<8x256xf32, #tpu.memory_space<vmem>>, vector<8x256xf32>
    tpu.vector_store %arg8[%c0_175, %c0_176], %362 {strides = array<i32>} : memref<8x256xf32, #tpu.memory_space<vmem>>, vector<8x256xf32>,
    %c0_i32_177 = arith.constant 0 : i32
    %365 = arith.cmpi eq, %arg1, %c0_i32_177 : i32
    %366 = arith.extui %365 : i1 to i32
    %c0_i32_178 = arith.constant 0 : i32
    %367 = arith.cmpi ne, %366, %c0_i32_178 : i32
    scf.if %367 {
      %c0_179 = arith.constant 0 : index
      %c0_180 = arith.constant 0 : index
      %368 = vector.load %arg9[%c0_179, %c0_180] : memref<16x256xf32, #tpu.memory_space<vmem>>, vector<16x256xf32>
      %c0_181 = arith.constant 0 : index
      %c0_182 = arith.constant 0 : index
      %369 = vector.load %arg5[%c0_181, %c0_182] : memref<16x1xf32, #tpu.memory_space<vmem>>, vector<16x1xf32>
      %370 = vector.broadcast %369 : vector<16x1xf32> to vector<16x256xf32>
      %371 = arith.addf %368, %370 : vector<16x256xf32>
      %c0_183 = arith.constant 0 : index
      %c0_184 = arith.constant 0 : index
      %372 = vector.load %arg7[%c0_183, %c0_184] : memref<8x256xf32, #tpu.memory_space<vmem>>, vector<8x256xf32>
      %c0_185 = arith.constant 0 : index
      %c0_186 = arith.constant 0 : index
      %373 = vector.load %arg8[%c0_185, %c0_186] : memref<8x256xf32, #tpu.memory_space<vmem>>, vector<8x256xf32>
      %374 = tpu.concatenate %372, %373 in 0 : vector<8x256xf32>, vector<8x256xf32> -> vector<16x256xf32>
      %375 = arith.negf %374 : vector<16x256xf32>
      %376 = math.exp %375 : vector<16x256xf32>
      %cst_187 = arith.constant 1.000000e+00 : f32
      %377 = vector.broadcast %cst_187 : f32 to vector<16x256xf32>
      %378 = arith.addf %377, %376 : vector<16x256xf32>
      %379 = arith.divf %377, %378 : vector<16x256xf32>
      %380 = arith.mulf %379, %371 : vector<16x256xf32>
      %c0_188 = arith.constant 0 : index
      %c0_189 = arith.constant 0 : index
      %381 = vector.load %arg6[%c0_188, %c0_189] : memref<16x256xf32, #tpu.memory_space<vmem>>, vector<16x256xf32>
      tpu.vector_store %arg6[%c0_188, %c0_189], %380 {strides = array<i32>} : memref<16x256xf32, #tpu.memory_space<vmem>>, vector<16x256xf32>,
    } else {
    }
    return
  }
  func.func @transform_0(%arg0: i32, %arg1: i32) -> (i32, i32) {
    %c0_i32 = arith.constant 0 : i32
    return %arg1, %arg0 : i32, i32
  }
  func.func @transform_1(%arg0: i32, %arg1: i32) -> (i32, i32) {
    %c0_i32 = arith.constant 0 : i32
    %c0_i32_0 = arith.constant 0 : i32
    return %c0_i32, %arg1 : i32, i32
  }
  func.func @transform_2(%arg0: i32, %arg1: i32) -> (i32, i32) {
    %c0_i32 = arith.constant 0 : i32
    %c0_i32_0 = arith.constant 0 : i32
    return %c0_i32, %arg1 : i32, i32
  }
  func.func @transform_3(%arg0: i32, %arg1: i32) -> (i32, i32) {
    %c0_i32 = arith.constant 0 : i32
    %c0_i32_0 = arith.constant 0 : i32
    %c0_i32_1 = arith.constant 0 : i32
    return %c0_i32, %c0_i32_0 : i32, i32
  }
  func.func @transform_4(%arg0: i32, %arg1: i32) -> (i32, i32) {
    %c0_i32 = arith.constant 0 : i32
    %c0_i32_0 = arith.constant 0 : i32
    return %c0_i32, %arg0 : i32, i32
  }
}

</mosaic_0001>

<llo_original>
// kernel: tpu_custom_call.1
$region0: #{tpu_custom_call.1}
  #allocation0 [shape = 'u32[]', space=smem, size = 0x4, offset = 0x4, fixed_abs, tag = 'smem constant byte address 0x4 - core index']
  #allocation1 [shape = 'u32[72,128]{1,0:T(1,128)}', space=vmem, size = 0x9000, scoped, tag = 'internal scratch']
  #allocation2 [shape = 'f32[8,256]{1,0:T(8,128)}', space=vmem, size = 0x2000, scoped, tag = 'scratch operand']
  #allocation3 [shape = 'f32[8,256]{1,0:T(8,128)}', space=vmem, size = 0x2000, scoped, tag = 'scratch operand']
  #allocation4 [shape = 'f32[16,256]{1,0:T(8,128)}', space=vmem, size = 0x4000, scoped, tag = 'scratch operand']
  %s0 = inlined_call_operand.hbm [shape: f32[32,256], index: 0, kind: input, shape index: {}]
  %s1 = inlined_call_operand.vmem [shape: f32[16,32], index: 1, kind: input, shape index: {}]
  %s2 = inlined_call_operand.hbm [shape: f32[16,32], index: 2, kind: input, shape index: {}]
  %s3 = inlined_call_operand.vmem [shape: f32[16,1], index: 3, kind: input, shape index: {}]
  %s4 = inlined_call_operand.hbm [shape: f32[16,256], index: 4, kind: output, shape index: {}]
  %s5 = sld [smem:[#allocation0]]
  $region42: #{tpu_custom_call.1} parent=0
    _
  %s7 = ssub.s32 1, %s5
  %s8 = scalar_select 0, %s7, %s5
  $region1: #{tpu_custom_call.1} parent=0
    #allocation5 [shape = 'u8[32768]{0}', space=vmem, size = 0x8000, scoped, tag = 'input window, operand 0, single buffered']
    #allocation6 [shape = 's32[1]{0}', space=sflag, size = 0x4, scoped, tag = 'scoped memory for tpu_custom_call.1']
    #allocation7 [shape = 's32[1]{0}', space=sflag, size = 0x4, scoped, tag = 'scoped memory for tpu_custom_call.1']
    #allocation8 [shape = 'u8[8192]{0}', space=vmem, size = 0x2000, scoped, tag = 'input window, operand 2, single buffered']
    #allocation9 [shape = 's32[1]{0}', space=sflag, size = 0x4, scoped, tag = 'scoped memory for tpu_custom_call.1']
    #allocation10 [shape = 'u8[16384]{0}', space=vmem, size = 0x4000, scoped, tag = 'output window, operand 0, single buffered']
    %9 = vsyncpa [#allocation6], 0
    %10 = vsyncpa [#allocation9], 0
    %11 = vsyncpa [#allocation7], 0
    // Predicated region
    $region2: #{tpu_custom_call.1} parent=1 // pred_check
      _
    $region3: #{tpu_custom_call.1} parent=1 // pred_check_branch
      %13 = sbr.rel (0) target = $region5
    $region4: #{tpu_custom_call.1} parent=1 // pred_region
      %15 = vsyncadd [#allocation6], 0
      %s16 = sshll.u32 %s0, 4
      %s17 = int_to_ptr.hbm [resolvable:$true] %s16
      %s18 = sshll.u32 [#allocation5], 4
      %s19 = int_to_ptr.vmem [resolvable:$true] %s18
      %24 = dma.hbm_to_vmem [thread:$0]  %s17, 1024, %s19, [#allocation6], 256, 256, 16
    $region5: #{tpu_custom_call.1} parent=1 // pred_fallthru
      _
    // Predicated region
    $region6: #{tpu_custom_call.1} parent=1 // pred_check
      _
    $region7: #{tpu_custom_call.1} parent=1 // pred_check_branch
      %26 = sbr.rel (0) target = $region9
    $region8: #{tpu_custom_call.1} parent=1 // pred_region
      _
    $region9: #{tpu_custom_call.1} parent=1 // pred_fallthru
      _
    // Predicated region
    $region10: #{tpu_custom_call.1} parent=1 // pred_check
      _
    $region11: #{tpu_custom_call.1} parent=1 // pred_check_branch
      %28 = sbr.rel (0) target = $region13
    $region12: #{tpu_custom_call.1} parent=1 // pred_region
      %30 = vsyncadd [#allocation9], 0
      %s31 = sshll.u32 %s2, 4
      %s32 = int_to_ptr.hbm [resolvable:$true] %s31
      %s33 = sshll.u32 [#allocation8], 4
      %s34 = int_to_ptr.vmem [resolvable:$true] %s33
      %39 = dma.hbm_to_vmem [thread:$0]  %s32, 256, %s34, [#allocation9], 128, 128, 8
    $region13: #{tpu_custom_call.1} parent=1 // pred_fallthru
      _
    // Predicated region
    $region14: #{tpu_custom_call.1} parent=1 // pred_check
      _
    $region15: #{tpu_custom_call.1} parent=1 // pred_check_branch
      %41 = sbr.rel (0) target = $region17
    $region16: #{tpu_custom_call.1} parent=1 // pred_region
      _
    $region17: #{tpu_custom_call.1} parent=1 // pred_fallthru
      _
    // Predicated region
    $region18: #{tpu_custom_call.1} parent=1 // pred_check
      _
    $region19: #{tpu_custom_call.1} parent=1 // pred_check_branch
      %43 = sbr.rel (0) target = $region21
    $region20: #{tpu_custom_call.1} parent=1 // pred_region
      %45 = dma.done [#allocation6], 1024
    $region21: #{tpu_custom_call.1} parent=1 // pred_fallthru
      _
    // Predicated region
    $region22: #{tpu_custom_call.1} parent=1 // pred_check
      _
    $region23: #{tpu_custom_call.1} parent=1 // pred_check_branch
      %47 = sbr.rel (0) target = $region25
    $region24: #{tpu_custom_call.1} parent=1 // pred_region
      %49 = dma.done [#allocation9], 256
    $region25: #{tpu_custom_call.1} parent=1 // pred_fallthru
      _
    %p50 = scmp.eq.s32.totalorder 0, 0
    // Predicated region
    $region26: #{tpu_custom_call.1} parent=1 // pred_check
      %p51 = pneg %p50
    $region27: #{tpu_custom_call.1} parent=1 // pred_check_branch
      %53 = sbr.rel (%p51) target = $region29
    $region28: #{tpu_custom_call.1} parent=1 // pred_region
      %54 = vst [vmem:[#allocation2] sm:$0xff] 0.0
      %55 = vst [vmem:[#allocation2 + $0x8] sm:$0xff] 0.0
      %56 = vst [vmem:[#allocation3] sm:$0xff] 0.0
      %57 = vst [vmem:[#allocation3 + $0x8] sm:$0xff] 0.0
      %58 = vst [vmem:[#allocation4] sm:$0xff] 0.0
      %59 = vst [vmem:[#allocation4 + $0x8] sm:$0xff] 0.0
      %60 = vst [vmem:[#allocation4 + $0x10] sm:$0xff] 0.0
      %61 = vst [vmem:[#allocation4 + $0x18] sm:$0xff] 0.0
    $region29: #{tpu_custom_call.1} parent=1 // pred_fallthru
      _
    %v62 = vld [vmem:[#allocation5] sm:$0xff]
    %v63 = vld [vmem:[#allocation5 + $0x8] sm:$0xff]
    %v64 = vld [vmem:[#allocation5 + $0x10] sm:$0xff]
    %v65 = vld [vmem:[#allocation5 + $0x18] sm:$0xff]
    %v66 = vld [vmem:[#allocation5 + $0x20] sm:$0xff]
    %v67 = vld [vmem:[#allocation5 + $0x28] sm:$0xff]
    %v68 = vld [vmem:[#allocation5 + $0x30] sm:$0xff]
    %v69 = vld [vmem:[#allocation5 + $0x38] sm:$0xff]
    %v70 = vld [vmem:[#allocation8] sm:$0xff]
    %v71 = vld [vmem:[#allocation8 + $0x8] sm:$0xff]
    %v72 = vld [vmem:[#allocation4] sm:$0xff]
    %v73 = vld [vmem:[#allocation4 + $0x8] sm:$0xff]
    %v74 = vld [vmem:[#allocation4 + $0x10] sm:$0xff]
    %v75 = vld [vmem:[#allocation4 + $0x18] sm:$0xff]
    %vm76 = vcmask 261120
    %v78 = vsel %vm76, %v70, 0
    %v81 = vsel %vm76, %v71, 0
    %83 = vmatpush.msra.mxu0 0.0
    %84 = vmatpush.msra.mxu0 0.0
    %85 = vmatpush.msra.mxu0 0.0
    %86 = vmatpush.msra.mxu0 0.0
    %87 = vmatpush.msra.mxu0 0.0
    %88 = vmatpush.msra.mxu0 0.0
    %89 = vmatpush.msra.mxu0 0.0
    %90 = vmatpush.msra.mxu0 0.0
    %91 = vmatpush.msra.mxu0 0.0
    %92 = vmatpush.msra.mxu0 0.0
    %93 = vmatpush.msra.mxu0 0.0
    %94 = vmatpush.msra.mxu0 0.0
    %95 = vmatpush.msra.mxu0 %v68
    %96 = vmatpush.msra.mxu0 %v66
    %97 = vmatpush.msra.mxu0 %v64
    %98 = vmatpush.msra.mxu0 %v62
    %99 = vmatmul.f32.gmra.mxu0 %v78
    %v100 = vpop.f32.mrf.mxu0
    %v101 = vadd.f32 0.0, %v100
    %102 = vmatmul.f32.gmra.mxu0 %v81
    %v103 = vpop.f32.mrf.mxu0
    %v104 = vadd.f32 0.0, %v103
    %105 = vdwg.mxu0
    %106 = vmatpush.msra.mxu0 0.0
    %107 = vmatpush.msra.mxu0 0.0
    %108 = vmatpush.msra.mxu0 0.0
    %109 = vmatpush.msra.mxu0 0.0
    %110 = vmatpush.msra.mxu0 0.0
    %111 = vmatpush.msra.mxu0 0.0
    %112 = vmatpush.msra.mxu0 0.0
    %113 = vmatpush.msra.mxu0 0.0
    %114 = vmatpush.msra.mxu0 0.0
    %115 = vmatpush.msra.mxu0 0.0
    %116 = vmatpush.msra.mxu0 0.0
    %117 = vmatpush.msra.mxu0 0.0
    %118 = vmatpush.msra.mxu0 %v69
    %119 = vmatpush.msra.mxu0 %v67
    %120 = vmatpush.msra.mxu0 %v65
    %121 = vmatpush.msra.mxu0 %v63
    %122 = vmatmul.f32.gmra.mxu0 %v78
    %v123 = vpop.f32.mrf.mxu0
    %v124 = vadd.f32 0.0, %v123
    %125 = vmatmul.f32.gmra.mxu0 %v81
    %v126 = vpop.f32.mrf.mxu0
    %v127 = vadd.f32 0.0, %v126
    %128 = vdwg.mxu0
    %v129 = vadd.f32 %v72, %v101
    %v130 = vadd.f32 %v73, %v124
    %v131 = vadd.f32 %v74, %v104
    %v132 = vadd.f32 %v75, %v127
    %133 = vst [vmem:[#allocation4] sm:$0xff] %v129
    %134 = vst [vmem:[#allocation4 + $0x8] sm:$0xff] %v130
    %135 = vst [vmem:[#allocation4 + $0x10] sm:$0xff] %v131
    %136 = vst [vmem:[#allocation4 + $0x18] sm:$0xff] %v132
    %v137 = vld [vmem:[#allocation2] sm:$0xff]
    %v138 = vld [vmem:[#allocation2 + $0x8] sm:$0xff]
    %v139 = vld [vmem:[#allocation3] sm:$0xff]
    %v140 = vld [vmem:[#allocation3 + $0x8] sm:$0xff]
    %v141 = vld [vmem:[%s1] sm:$0xff]
    %v142 = vld [vmem:[%s1 + $0x8] sm:$0xff]
    %v143 = vld [vmem:[#allocation5] ss:$8 sm:$0x3]
    %145 = vset.pattern.permute.xlu0 0
    %146 = vperm.xlu0 %145, %v141
    %v147 = vpop.permute.xlu0 %146
    %v149 = vadd.f32 %v137, %v147
    %v150 = vadd.f32 %v138, %v147
    %v152 = vperm.slane %v143, 0
    %v153 = vperm.slane %v143, 1
    %v156 = vmul.f32 %v149, %v152
    %v157 = vmul.f32 %v150, %v153
    %v158 = vadd.f32 %v139, %v152
    %v159 = vadd.f32 %v140, %v153
    %161 = vset.pattern.permute.xlu0 0
    %162 = vperm.xlu0 %161, %v142
    %v163 = vpop.permute.xlu0 %162
    %v165 = vmul.f32 %v158, %v163
    %v166 = vmul.f32 %v159, %v163
    %s167 = scalar_lea.vmem [#allocation5], 1
    %v168 = vld [vmem:[%s167] ss:$8 sm:$0x3]
    %v170 = vperm.slane %v168, 0
    %v171 = vperm.slane %v168, 1
    %v174 = vadd.f32 %v156, %v170
    %v175 = vadd.f32 %v157, %v171
    %176 = vset.pattern.permute.xlu0 1
    %177 = vperm.xlu0 %176, %v141
    %v178 = vpop.permute.xlu0 %177
    %v180 = vmul.f32 %v174, %v178
    %v181 = vmul.f32 %v175, %v178
    %182 = vset.pattern.permute.xlu0 1
    %183 = vperm.xlu0 %182, %v142
    %v184 = vpop.permute.xlu0 %183
    %v186 = vadd.f32 %v165, %v184
    %v187 = vadd.f32 %v166, %v184
    %v188 = vmul.f32 %v186, %v170
    %v189 = vmul.f32 %v187, %v171
    %s190 = scalar_lea.vmem [#allocation5], 2
    %v191 = vld [vmem:[%s190] ss:$8 sm:$0x3]
    %192 = vset.pattern.permute.xlu0 2
    %193 = vperm.xlu0 %192, %v141
    %v194 = vpop.permute.xlu0 %193
    %v196 = vadd.f32 %v180, %v194
    %v197 = vadd.f32 %v181, %v194
    %v199 = vperm.slane %v191, 0
    %v200 = vperm.slane %v191, 1
    %v203 = vmul.f32 %v196, %v199
    %v204 = vmul.f32 %v197, %v200
    %v205 = vadd.f32 %v188, %v199
    %v206 = vadd.f32 %v189, %v200
    %207 = vset.pattern.permute.xlu0 2
    %208 = vperm.xlu0 %207, %v142
    %v209 = vpop.permute.xlu0 %208
    %v211 = vmul.f32 %v205, %v209
    %v212 = vmul.f32 %v206, %v209
    %s213 = scalar_lea.vmem [#allocation5], 3
    %v214 = vld [vmem:[%s213] ss:$8 sm:$0x3]
    %v216 = vperm.slane %v214, 0
    %v217 = vperm.slane %v214, 1
    %v220 = vadd.f32 %v203, %v216
    %v221 = vadd.f32 %v204, %v217
    %222 = vset.pattern.permute.xlu0 3
    %223 = vperm.xlu0 %222, %v141
    %v224 = vpop.permute.xlu0 %223
    %v226 = vmul.f32 %v220, %v224
    %v227 = vmul.f32 %v221, %v224
    %228 = vset.pattern.permute.xlu0 3
    %229 = vperm.xlu0 %228, %v142
    %v230 = vpop.permute.xlu0 %229
    %v232 = vadd.f32 %v211, %v230
    %v233 = vadd.f32 %v212, %v230
    %v234 = vmul.f32 %v232, %v216
    %v235 = vmul.f32 %v233, %v217
    %s236 = scalar_lea.vmem [#allocation5], 4
    %v237 = vld [vmem:[%s236] ss:$8 sm:$0x3]
    %238 = vset.pattern.permute.xlu0 4
    %239 = vperm.xlu0 %238, %v141
    %v240 = vpop.permute.xlu0 %239
    %v242 = vadd.f32 %v226, %v240
    %v243 = vadd.f32 %v227, %v240
    %v245 = vperm.slane %v237, 0
    %v246 = vperm.slane %v237, 1
    %v249 = vmul.f32 %v242, %v245
    %v250 = vmul.f32 %v243, %v246
    %v251 = vadd.f32 %v234, %v245
    %v252 = vadd.f32 %v235, %v246
    %253 = vset.pattern.permute.xlu0 4
    %254 = vperm.xlu0 %253, %v142
    %v255 = vpop.permute.xlu0 %254
    %v257 = vmul.f32 %v251, %v255
    %v258 = vmul.f32 %v252, %v255
    %s259 = scalar_lea.vmem [#allocation5], 5
    %v260 = vld [vmem:[%s259] ss:$8 sm:$0x3]
    %v262 = vperm.slane %v260, 0
    %v263 = vperm.slane %v260, 1
    %v266 = vadd.f32 %v249, %v262
    %v267 = vadd.f32 %v250, %v263
    %268 = vset.pattern.permute.xlu0 5
    %269 = vperm.xlu0 %268, %v141
    %v270 = vpop.permute.xlu0 %269
    %v272 = vmul.f32 %v266, %v270
    %v273 = vmul.f32 %v267, %v270
    %274 = vset.pattern.permute.xlu0 5
    %275 = vperm.xlu0 %274, %v142
    %v276 = vpop.permute.xlu0 %275
    %v278 = vadd.f32 %v257, %v276
    %v279 = vadd.f32 %v258, %v276
    %v280 = vmul.f32 %v278, %v262
    %v281 = vmul.f32 %v279, %v263
    %s282 = scalar_lea.vmem [#allocation5], 6
    %v283 = vld [vmem:[%s282] ss:$8 sm:$0x3]
    %284 = vset.pattern.permute.xlu0 6
    %285 = vperm.xlu0 %284, %v141
    %v286 = vpop.permute.xlu0 %285
    %v288 = vadd.f32 %v272, %v286
    %v289 = vadd.f32 %v273, %v286
    %v291 = vperm.slane %v283, 0
    %v292 = vperm.slane %v283, 1
    %v295 = vmul.f32 %v288, %v291
    %v296 = vmul.f32 %v289, %v292
    %v297 = vadd.f32 %v280, %v291
    %v298 = vadd.f32 %v281, %v292
    %299 = vset.pattern.permute.xlu0 6
    %300 = vperm.xlu0 %299, %v142
    %v301 = vpop.permute.xlu0 %300
    %v303 = vmul.f32 %v297, %v301
    %v304 = vmul.f32 %v298, %v301
    %s305 = scalar_lea.vmem [#allocation5], 7
    %v306 = vld [vmem:[%s305] ss:$8 sm:$0x3]
    %v308 = vperm.slane %v306, 0
    %v309 = vperm.slane %v306, 1
    %v312 = vadd.f32 %v295, %v308
    %v313 = vadd.f32 %v296, %v309
    %314 = vset.pattern.permute.xlu0 7
    %315 = vperm.xlu0 %314, %v141
    %v316 = vpop.permute.xlu0 %315
    %v318 = vmul.f32 %v312, %v316
    %v319 = vmul.f32 %v313, %v316
    %320 = vset.pattern.permute.xlu0 7
    %321 = vperm.xlu0 %320, %v142
    %v322 = vpop.permute.xlu0 %321
    %v324 = vadd.f32 %v303, %v322
    %v325 = vadd.f32 %v304, %v322
    %v326 = vmul.f32 %v324, %v308
    %v327 = vmul.f32 %v325, %v309
    %s328 = scalar_lea.vmem [#allocation5], 16
    %v329 = vld [vmem:[%s328] ss:$8 sm:$0x3]
    %330 = vset.pattern.permute.xlu0 8
    %331 = vperm.xlu0 %330, %v141
    %v332 = vpop.permute.xlu0 %331
    %v334 = vadd.f32 %v318, %v332
    %v335 = vadd.f32 %v319, %v332
    %v337 = vperm.slane %v329, 0
    %v338 = vperm.slane %v329, 1
    %v341 = vmul.f32 %v334, %v337
    %v342 = vmul.f32 %v335, %v338
    %v343 = vadd.f32 %v326, %v337
    %v344 = vadd.f32 %v327, %v338
    %345 = vset.pattern.permute.xlu0 8
    %346 = vperm.xlu0 %345, %v142
    %v347 = vpop.permute.xlu0 %346
    %v349 = vmul.f32 %v343, %v347
    %v350 = vmul.f32 %v344, %v347
    %s351 = scalar_lea.vmem [#allocation5], 17
    %v352 = vld [vmem:[%s351] ss:$8 sm:$0x3]
    %v354 = vperm.slane %v352, 0
    %v355 = vperm.slane %v352, 1
    %v358 = vadd.f32 %v341, %v354
    %v359 = vadd.f32 %v342, %v355
    %360 = vset.pattern.permute.xlu0 9
    %361 = vperm.xlu0 %360, %v141
    %v362 = vpop.permute.xlu0 %361
    %v364 = vmul.f32 %v358, %v362
    %v365 = vmul.f32 %v359, %v362
    %366 = vset.pattern.permute.xlu0 9
    %367 = vperm.xlu0 %366, %v142
    %v368 = vpop.permute.xlu0 %367
    %v370 = vadd.f32 %v349, %v368
    %v371 = vadd.f32 %v350, %v368
    %v372 = vmul.f32 %v370, %v354
    %v373 = vmul.f32 %v371, %v355
    %s374 = scalar_lea.vmem [#allocation5], 18
    %v375 = vld [vmem:[%s374] ss:$8 sm:$0x3]
    %376 = vset.pattern.permute.xlu0 10
    %377 = vperm.xlu0 %376, %v141
    %v378 = vpop.permute.xlu0 %377
    %v380 = vadd.f32 %v364, %v378
    %v381 = vadd.f32 %v365, %v378
    %v383 = vperm.slane %v375, 0
    %v384 = vperm.slane %v375, 1
    %v387 = vmul.f32 %v380, %v383
    %v388 = vmul.f32 %v381, %v384
    %v389 = vadd.f32 %v372, %v383
    %v390 = vadd.f32 %v373, %v384
    %391 = vset.pattern.permute.xlu0 10
    %392 = vperm.xlu0 %391, %v142
    %v393 = vpop.permute.xlu0 %392
    %v395 = vmul.f32 %v389, %v393
    %v396 = vmul.f32 %v390, %v393
    %s397 = scalar_lea.vmem [#allocation5], 19
    %v398 = vld [vmem:[%s397] ss:$8 sm:$0x3]
    %v400 = vperm.slane %v398, 0
    %v401 = vperm.slane %v398, 1
    %v404 = vadd.f32 %v387, %v400
    %v405 = vadd.f32 %v388, %v401
    %406 = vset.pattern.permute.xlu0 11
    %407 = vperm.xlu0 %406, %v141
    %v408 = vpop.permute.xlu0 %407
    %v410 = vmul.f32 %v404, %v408
    %v411 = vmul.f32 %v405, %v408
    %412 = vset.pattern.permute.xlu0 11
    %413 = vperm.xlu0 %412, %v142
    %v414 = vpop.permute.xlu0 %413
    %v416 = vadd.f32 %v395, %v414
    %v417 = vadd.f32 %v396, %v414
    %v418 = vmul.f32 %v416, %v400
    %v419 = vmul.f32 %v417, %v401
    %s420 = scalar_lea.vmem [#allocation5], 20
    %v421 = vld [vmem:[%s420] ss:$8 sm:$0x3]
    %422 = vset.pattern.permute.xlu0 12
    %423 = vperm.xlu0 %422, %v141
    %v424 = vpop.permute.xlu0 %423
    %v426 = vadd.f32 %v410, %v424
    %v427 = vadd.f32 %v411, %v424
    %v429 = vperm.slane %v421, 0
    %v430 = vperm.slane %v421, 1
    %v433 = vmul.f32 %v426, %v429
    %v434 = vmul.f32 %v427, %v430
    %v435 = vadd.f32 %v418, %v429
    %v436 = vadd.f32 %v419, %v430
    %437 = vset.pattern.permute.xlu0 12
    %438 = vperm.xlu0 %437, %v142
    %v439 = vpop.permute.xlu0 %438
    %v441 = vmul.f32 %v435, %v439
    %v442 = vmul.f32 %v436, %v439
    %s443 = scalar_lea.vmem [#allocation5], 21
    %v444 = vld [vmem:[%s443] ss:$8 sm:$0x3]
    %v446 = vperm.slane %v444, 0
    %v447 = vperm.slane %v444, 1
    %v450 = vadd.f32 %v433, %v446
    %v451 = vadd.f32 %v434, %v447
    %452 = vset.pattern.permute.xlu0 13
    %453 = vperm.xlu0 %452, %v141
    %v454 = vpop.permute.xlu0 %453
    %v456 = vmul.f32 %v450, %v454
    %v457 = vmul.f32 %v451, %v454
    %458 = vset.pattern.permute.xlu0 13
    %459 = vperm.xlu0 %458, %v142
    %v460 = vpop.permute.xlu0 %459
    %v462 = vadd.f32 %v441, %v460
    %v463 = vadd.f32 %v442, %v460
    %v464 = vmul.f32 %v462, %v446
    %v465 = vmul.f32 %v463, %v447
    %s466 = scalar_lea.vmem [#allocation5], 22
    %v467 = vld [vmem:[%s466] ss:$8 sm:$0x3]
    %468 = vset.pattern.permute.xlu0 14
    %469 = vperm.xlu0 %468, %v141
    %v470 = vpop.permute.xlu0 %469
    %v472 = vadd.f32 %v456, %v470
    %v473 = vadd.f32 %v457, %v470
    %v475 = vperm.slane %v467, 0
    %v476 = vperm.slane %v467, 1
    %v479 = vmul.f32 %v472, %v475
    %v480 = vmul.f32 %v473, %v476
    %v481 = vadd.f32 %v464, %v475
    %v482 = vadd.f32 %v465, %v476
    %483 = vset.pattern.permute.xlu0 14
    %484 = vperm.xlu0 %483, %v142
    %v485 = vpop.permute.xlu0 %484
    %v487 = vmul.f32 %v481, %v485
    %v488 = vmul.f32 %v482, %v485
    %s489 = scalar_lea.vmem [#allocation5], 23
    %v490 = vld [vmem:[%s489] ss:$8 sm:$0x3]
    %v492 = vperm.slane %v490, 0
    %v493 = vperm.slane %v490, 1
    %v496 = vadd.f32 %v479, %v492
    %v497 = vadd.f32 %v480, %v493
    %498 = vset.pattern.permute.xlu0 15
    %499 = vperm.xlu0 %498, %v141
    %v500 = vpop.permute.xlu0 %499
    %v502 = vmul.f32 %v496, %v500
    %v503 = vmul.f32 %v497, %v500
    %504 = vset.pattern.permute.xlu0 15
    %505 = vperm.xlu0 %504, %v142
    %v506 = vpop.permute.xlu0 %505
    %v508 = vadd.f32 %v487, %v506
    %v509 = vadd.f32 %v488, %v506
    %v510 = vmul.f32 %v508, %v492
    %v511 = vmul.f32 %v509, %v493
    %s512 = scalar_lea.vmem [#allocation5], 32
    %v513 = vld [vmem:[%s512] ss:$8 sm:$0x3]
    %514 = vset.pattern.permute.xlu0 16
    %515 = vperm.xlu0 %514, %v141
    %v516 = vpop.permute.xlu0 %515
    %v518 = vadd.f32 %v502, %v516
    %v519 = vadd.f32 %v503, %v516
    %v521 = vperm.slane %v513, 0
    %v522 = vperm.slane %v513, 1
    %v525 = vmul.f32 %v518, %v521
    %v526 = vmul.f32 %v519, %v522
    %v527 = vadd.f32 %v510, %v521
    %v528 = vadd.f32 %v511, %v522
    %529 = vset.pattern.permute.xlu0 16
    %530 = vperm.xlu0 %529, %v142
    %v531 = vpop.permute.xlu0 %530
    %v533 = vmul.f32 %v527, %v531
    %v534 = vmul.f32 %v528, %v531
    %s535 = scalar_lea.vmem [#allocation5], 33
    %v536 = vld [vmem:[%s535] ss:$8 sm:$0x3]
    %v538 = vperm.slane %v536, 0
    %v539 = vperm.slane %v536, 1
    %v542 = vadd.f32 %v525, %v538
    %v543 = vadd.f32 %v526, %v539
    %544 = vset.pattern.permute.xlu0 17
    %545 = vperm.xlu0 %544, %v141
    %v546 = vpop.permute.xlu0 %545
    %v548 = vmul.f32 %v542, %v546
    %v549 = vmul.f32 %v543, %v546
    %550 = vset.pattern.permute.xlu0 17
    %551 = vperm.xlu0 %550, %v142
    %v552 = vpop.permute.xlu0 %551
    %v554 = vadd.f32 %v533, %v552
    %v555 = vadd.f32 %v534, %v552
    %v556 = vmul.f32 %v554, %v538
    %v557 = vmul.f32 %v555, %v539
    %s558 = scalar_lea.vmem [#allocation5], 34
    %v559 = vld [vmem:[%s558] ss:$8 sm:$0x3]
    %560 = vset.pattern.permute.xlu0 18
    %561 = vperm.xlu0 %560, %v141
    %v562 = vpop.permute.xlu0 %561
    %v564 = vadd.f32 %v548, %v562
    %v565 = vadd.f32 %v549, %v562
    %v567 = vperm.slane %v559, 0
    %v568 = vperm.slane %v559, 1
    %v571 = vmul.f32 %v564, %v567
    %v572 = vmul.f32 %v565, %v568
    %v573 = vadd.f32 %v556, %v567
    %v574 = vadd.f32 %v557, %v568
    %575 = vset.pattern.permute.xlu0 18
    %576 = vperm.xlu0 %575, %v142
    %v577 = vpop.permute.xlu0 %576
    %v579 = vmul.f32 %v573, %v577
    %v580 = vmul.f32 %v574, %v577
    %s581 = scalar_lea.vmem [#allocation5], 35
    %v582 = vld [vmem:[%s581] ss:$8 sm:$0x3]
    %v584 = vperm.slane %v582, 0
    %v585 = vperm.slane %v582, 1
    %v588 = vadd.f32 %v571, %v584
    %v589 = vadd.f32 %v572, %v585
    %590 = vset.pattern.permute.xlu0 19
    %591 = vperm.xlu0 %590, %v141
    %v592 = vpop.permute.xlu0 %591
    %v594 = vmul.f32 %v588, %v592
    %v595 = vmul.f32 %v589, %v592
    %596 = vset.pattern.permute.xlu0 19
    %597 = vperm.xlu0 %596, %v142
    %v598 = vpop.permute.xlu0 %597
    %v600 = vadd.f32 %v579, %v598
    %v601 = vadd.f32 %v580, %v598
    %v602 = vmul.f32 %v600, %v584
    %v603 = vmul.f32 %v601, %v585
    %s604 = scalar_lea.vmem [#allocation5], 36
    %v605 = vld [vmem:[%s604] ss:$8 sm:$0x3]
    %606 = vset.pattern.permute.xlu0 20
    %607 = vperm.xlu0 %606, %v141
    %v608 = vpop.permute.xlu0 %607
    %v610 = vadd.f32 %v594, %v608
    %v611 = vadd.f32 %v595, %v608
    %v613 = vperm.slane %v605, 0
    %v614 = vperm.slane %v605, 1
    %v617 = vmul.f32 %v610, %v613
    %v618 = vmul.f32 %v611, %v614
    %v619 = vadd.f32 %v602, %v613
    %v620 = vadd.f32 %v603, %v614
    %621 = vset.pattern.permute.xlu0 20
    %622 = vperm.xlu0 %621, %v142
    %v623 = vpop.permute.xlu0 %622
    %v625 = vmul.f32 %v619, %v623
    %v626 = vmul.f32 %v620, %v623
    %s627 = scalar_lea.vmem [#allocation5], 37
    %v628 = vld [vmem:[%s627] ss:$8 sm:$0x3]
    %v630 = vperm.slane %v628, 0
    %v631 = vperm.slane %v628, 1
    %v634 = vadd.f32 %v617, %v630
    %v635 = vadd.f32 %v618, %v631
    %636 = vset.pattern.permute.xlu0 21
    %637 = vperm.xlu0 %636, %v141
    %v638 = vpop.permute.xlu0 %637
    %v640 = vmul.f32 %v634, %v638
    %v641 = vmul.f32 %v635, %v638
    %642 = vset.pattern.permute.xlu0 21
    %643 = vperm.xlu0 %642, %v142
    %v644 = vpop.permute.xlu0 %643
    %v646 = vadd.f32 %v625, %v644
    %v647 = vadd.f32 %v626, %v644
    %v648 = vmul.f32 %v646, %v630
    %v649 = vmul.f32 %v647, %v631
    %s650 = scalar_lea.vmem [#allocation5], 38
    %v651 = vld [vmem:[%s650] ss:$8 sm:$0x3]
    %652 = vset.pattern.permute.xlu0 22
    %653 = vperm.xlu0 %652, %v141
    %v654 = vpop.permute.xlu0 %653
    %v656 = vadd.f32 %v640, %v654
    %v657 = vadd.f32 %v641, %v654
    %v659 = vperm.slane %v651, 0
    %v660 = vperm.slane %v651, 1
    %v663 = vmul.f32 %v656, %v659
    %v664 = vmul.f32 %v657, %v660
    %v665 = vadd.f32 %v648, %v659
    %v666 = vadd.f32 %v649, %v660
    %667 = vset.pattern.permute.xlu0 22
    %668 = vperm.xlu0 %667, %v142
    %v669 = vpop.permute.xlu0 %668
    %v671 = vmul.f32 %v665, %v669
    %v672 = vmul.f32 %v666, %v669
    %s673 = scalar_lea.vmem [#allocation5], 39
    %v674 = vld [vmem:[%s673] ss:$8 sm:$0x3]
    %v676 = vperm.slane %v674, 0
    %v677 = vperm.slane %v674, 1
    %v680 = vadd.f32 %v663, %v676
    %v681 = vadd.f32 %v664, %v677
    %682 = vset.pattern.permute.xlu0 23
    %683 = vperm.xlu0 %682, %v141
    %v684 = vpop.permute.xlu0 %683
    %v686 = vmul.f32 %v680, %v684
    %v687 = vmul.f32 %v681, %v684
    %688 = vset.pattern.permute.xlu0 23
    %689 = vperm.xlu0 %688, %v142
    %v690 = vpop.permute.xlu0 %689
    %v692 = vadd.f32 %v671, %v690
    %v693 = vadd.f32 %v672, %v690
    %v694 = vmul.f32 %v692, %v676
    %v695 = vmul.f32 %v693, %v677
    %s696 = scalar_lea.vmem [#allocation5], 48
    %v697 = vld [vmem:[%s696] ss:$8 sm:$0x3]
    %698 = vset.pattern.permute.xlu0 24
    %699 = vperm.xlu0 %698, %v141
    %v700 = vpop.permute.xlu0 %699
    %v702 = vadd.f32 %v686, %v700
    %v703 = vadd.f32 %v687, %v700
    %v705 = vperm.slane %v697, 0
    %v706 = vperm.slane %v697, 1
    %v709 = vmul.f32 %v702, %v705
    %v710 = vmul.f32 %v703, %v706
    %v711 = vadd.f32 %v694, %v705
    %v712 = vadd.f32 %v695, %v706
    %713 = vset.pattern.permute.xlu0 24
    %714 = vperm.xlu0 %713, %v142
    %v715 = vpop.permute.xlu0 %714
    %v717 = vmul.f32 %v711, %v715
    %v718 = vmul.f32 %v712, %v715
    %s719 = scalar_lea.vmem [#allocation5], 49
    %v720 = vld [vmem:[%s719] ss:$8 sm:$0x3]
    %v722 = vperm.slane %v720, 0
    %v723 = vperm.slane %v720, 1
    %v726 = vadd.f32 %v709, %v722
    %v727 = vadd.f32 %v710, %v723
    %728 = vset.pattern.permute.xlu0 25
    %729 = vperm.xlu0 %728, %v141
    %v730 = vpop.permute.xlu0 %729
    %v732 = vmul.f32 %v726, %v730
    %v733 = vmul.f32 %v727, %v730
    %734 = vset.pattern.permute.xlu0 25
    %735 = vperm.xlu0 %734, %v142
    %v736 = vpop.permute.xlu0 %735
    %v738 = vadd.f32 %v717, %v736
    %v739 = vadd.f32 %v718, %v736
    %v740 = vmul.f32 %v738, %v722
    %v741 = vmul.f32 %v739, %v723
    %s742 = scalar_lea.vmem [#allocation5], 50
    %v743 = vld [vmem:[%s742] ss:$8 sm:$0x3]
    %744 = vset.pattern.permute.xlu0 26
    %745 = vperm.xlu0 %744, %v141
    %v746 = vpop.permute.xlu0 %745
    %v748 = vadd.f32 %v732, %v746
    %v749 = vadd.f32 %v733, %v746
    %v751 = vperm.slane %v743, 0
    %v752 = vperm.slane %v743, 1
    %v755 = vmul.f32 %v748, %v751
    %v756 = vmul.f32 %v749, %v752
    %v757 = vadd.f32 %v740, %v751
    %v758 = vadd.f32 %v741, %v752
    %759 = vset.pattern.permute.xlu0 26
    %760 = vperm.xlu0 %759, %v142
    %v761 = vpop.permute.xlu0 %760
    %v763 = vmul.f32 %v757, %v761
    %v764 = vmul.f32 %v758, %v761
    %s765 = scalar_lea.vmem [#allocation5], 51
    %v766 = vld [vmem:[%s765] ss:$8 sm:$0x3]
    %v768 = vperm.slane %v766, 0
    %v769 = vperm.slane %v766, 1
    %v772 = vadd.f32 %v755, %v768
    %v773 = vadd.f32 %v756, %v769
    %774 = vset.pattern.permute.xlu0 27
    %775 = vperm.xlu0 %774, %v141
    %v776 = vpop.permute.xlu0 %775
    %v778 = vmul.f32 %v772, %v776
    %v779 = vmul.f32 %v773, %v776
    %780 = vset.pattern.permute.xlu0 27
    %781 = vperm.xlu0 %780, %v142
    %v782 = vpop.permute.xlu0 %781
    %v784 = vadd.f32 %v763, %v782
    %v785 = vadd.f32 %v764, %v782
    %v786 = vmul.f32 %v784, %v768
    %v787 = vmul.f32 %v785, %v769
    %s788 = scalar_lea.vmem [#allocation5], 52
    %v789 = vld [vmem:[%s788] ss:$8 sm:$0x3]
    %790 = vset.pattern.permute.xlu0 28
    %791 = vperm.xlu0 %790, %v141
    %v792 = vpop.permute.xlu0 %791
    %v794 = vadd.f32 %v778, %v792
    %v795 = vadd.f32 %v779, %v792
    %v797 = vperm.slane %v789, 0
    %v798 = vperm.slane %v789, 1
    %v801 = vmul.f32 %v794, %v797
    %v802 = vmul.f32 %v795, %v798
    %v803 = vadd.f32 %v786, %v797
    %v804 = vadd.f32 %v787, %v798
    %805 = vset.pattern.permute.xlu0 28
    %806 = vperm.xlu0 %805, %v142
    %v807 = vpop.permute.xlu0 %806
    %v809 = vmul.f32 %v803, %v807
    %v810 = vmul.f32 %v804, %v807
    %s811 = scalar_lea.vmem [#allocation5], 53
    %v812 = vld [vmem:[%s811] ss:$8 sm:$0x3]
    %v814 = vperm.slane %v812, 0
    %v815 = vperm.slane %v812, 1
    %v818 = vadd.f32 %v801, %v814
    %v819 = vadd.f32 %v802, %v815
    %820 = vset.pattern.permute.xlu0 29
    %821 = vperm.xlu0 %820, %v141
    %v822 = vpop.permute.xlu0 %821
    %v824 = vmul.f32 %v818, %v822
    %v825 = vmul.f32 %v819, %v822
    %826 = vset.pattern.permute.xlu0 29
    %827 = vperm.xlu0 %826, %v142
    %v828 = vpop.permute.xlu0 %827
    %v830 = vadd.f32 %v809, %v828
    %v831 = vadd.f32 %v810, %v828
    %v832 = vmul.f32 %v830, %v814
    %v833 = vmul.f32 %v831, %v815
    %s834 = scalar_lea.vmem [#allocation5], 54
    %v835 = vld [vmem:[%s834] ss:$8 sm:$0x3]
    %836 = vset.pattern.permute.xlu0 30
    %837 = vperm.xlu0 %836, %v141
    %v838 = vpop.permute.xlu0 %837
    %v840 = vadd.f32 %v824, %v838
    %v841 = vadd.f32 %v825, %v838
    %v843 = vperm.slane %v835, 0
    %v844 = vperm.slane %v835, 1
    %v847 = vmul.f32 %v840, %v843
    %v848 = vmul.f32 %v841, %v844
    %v849 = vadd.f32 %v832, %v843
    %v850 = vadd.f32 %v833, %v844
    %851 = vset.pattern.permute.xlu0 30
    %852 = vperm.xlu0 %851, %v142
    %v853 = vpop.permute.xlu0 %852
    %v855 = vmul.f32 %v849, %v853
    %v856 = vmul.f32 %v850, %v853
    %s857 = scalar_lea.vmem [#allocation5], 55
    %v858 = vld [vmem:[%s857] ss:$8 sm:$0x3]
    %v860 = vperm.slane %v858, 0
    %v861 = vperm.slane %v858, 1
    %v864 = vadd.f32 %v847, %v860
    %v865 = vadd.f32 %v848, %v861
    %866 = vset.pattern.permute.xlu0 31
    %867 = vperm.xlu0 %866, %v141
    %v868 = vpop.permute.xlu0 %867
    %v870 = vmul.f32 %v864, %v868
    %v871 = vmul.f32 %v865, %v868
    %872 = vset.pattern.permute.xlu0 31
    %873 = vperm.xlu0 %872, %v142
    %v874 = vpop.permute.xlu0 %873
    %v876 = vadd.f32 %v855, %v874
    %v877 = vadd.f32 %v856, %v874
    %v878 = vmul.f32 %v876, %v860
    %v879 = vmul.f32 %v877, %v861
    %880 = vst [vmem:[#allocation2] sm:$0xff] %v870
    %881 = vst [vmem:[#allocation2 + $0x8] sm:$0xff] %v871
    %882 = vst [vmem:[#allocation3] sm:$0xff] %v878
    %883 = vst [vmem:[#allocation3 + $0x8] sm:$0xff] %v879
    // Predicated region
    $region30: #{tpu_custom_call.1} parent=1 // pred_check
      %p884 = pneg %p50
    $region31: #{tpu_custom_call.1} parent=1 // pred_check_branch
      %886 = sbr.rel (%p884) target = $region33
    $region32: #{tpu_custom_call.1} parent=1 // pred_region
      %v887 = vld [vmem:[#allocation4] sm:$0xff]
      %v888 = vld [vmem:[#allocation4 + $0x8] sm:$0xff]
      %v889 = vld [vmem:[#allocation4 + $0x10] sm:$0xff]
      %v890 = vld [vmem:[#allocation4 + $0x18] sm:$0xff]
      %v891 = vld [vmem:[%s3] sm:$0xff]
      %v892 = vld [vmem:[%s3 + $0x8] sm:$0xff]
      %894 = vset.pattern.permute.xlu0 0
      %895 = vperm.xlu0 %894, %v891
      %v896 = vpop.permute.xlu0 %895
      %899 = vset.pattern.permute.xlu0 0
      %900 = vperm.xlu0 %899, %v892
      %v901 = vpop.permute.xlu0 %900
      %v903 = vadd.f32 %v887, %v896
      %v904 = vadd.f32 %v888, %v896
      %v905 = vadd.f32 %v889, %v901
      %v906 = vadd.f32 %v890, %v901
      %v907 = vld [vmem:[#allocation2] sm:$0xff]
      %v908 = vld [vmem:[#allocation2 + $0x8] sm:$0xff]
      %v909 = vld [vmem:[#allocation3] sm:$0xff]
      %v910 = vld [vmem:[#allocation3 + $0x8] sm:$0xff]
      %v911 = vxor.u32 %v907, 2147483648
      %v912 = vxor.u32 %v908, 2147483648
      %v913 = vxor.u32 %v909, 2147483648
      %v914 = vxor.u32 %v910, 2147483648
      %v915 = vmul.f32 %v911, 1.442695
      %v916 = vpow.pop %v915
      %v917 = vmul.f32 %v912, 1.442695
      %v918 = vpow.pop %v917
      %v919 = vmul.f32 %v913, 1.442695
      %v920 = vpow.pop %v919
      %v921 = vmul.f32 %v914, 1.442695
      %v922 = vpow.pop %v921
      %v923 = vadd.f32 %v916, 1.0
      %v924 = vadd.f32 %v918, 1.0
      %v925 = vadd.f32 %v920, 1.0
      %v926 = vadd.f32 %v922, 1.0
      %v927 = vrcp.pop %v923
      %v928 = vmul.f32 %v923, %v927
      %v929 = vsub.f32 1.0, %v928
      %v930 = vmul.f32 %v927, %v929
      %v931 = vadd.f32 %v927, %v930
      %vm932 = vweird.f32 %v923
      %vm933 = vweird.f32 %v927
      %vm934 = vmor %vm932, %vm933
      %v935 = vsel %vm934, %v927, %v931
      %v936 = vand.u32 2147483647, %v923
      %vm937 = vcmp.eq.f32.partialorder %v936, 8.507059e+37
      %v938 = vand.u32 %v923, 2147483648
      %v939 = vor.u32 1.1754944e-38, %v938
      %v940 = vsel %vm937, %v939, %v935
      %v941 = vmul.f32 1.0, %v940
      %v942 = vrcp.pop %v924
      %v943 = vmul.f32 %v924, %v942
      %v944 = vsub.f32 1.0, %v943
      %v945 = vmul.f32 %v942, %v944
      %v946 = vadd.f32 %v942, %v945
      %vm947 = vweird.f32 %v924
      %vm948 = vweird.f32 %v942
      %vm949 = vmor %vm947, %vm948
      %v950 = vsel %vm949, %v942, %v946
      %v951 = vand.u32 2147483647, %v924
      %vm952 = vcmp.eq.f32.partialorder %v951, 8.507059e+37
      %v953 = vand.u32 %v924, 2147483648
      %v954 = vor.u32 1.1754944e-38, %v953
      %v955 = vsel %vm952, %v954, %v950
      %v956 = vmul.f32 1.0, %v955
      %v957 = vrcp.pop %v925
      %v958 = vmul.f32 %v925, %v957
      %v959 = vsub.f32 1.0, %v958
      %v960 = vmul.f32 %v957, %v959
      %v961 = vadd.f32 %v957, %v960
      %vm962 = vweird.f32 %v925
      %vm963 = vweird.f32 %v957
      %vm964 = vmor %vm962, %vm963
      %v965 = vsel %vm964, %v957, %v961
      %v966 = vand.u32 2147483647, %v925
      %vm967 = vcmp.eq.f32.partialorder %v966, 8.507059e+37
      %v968 = vand.u32 %v925, 2147483648
      %v969 = vor.u32 1.1754944e-38, %v968
      %v970 = vsel %vm967, %v969, %v965
      %v971 = vmul.f32 1.0, %v970
      %v972 = vrcp.pop %v926
      %v973 = vmul.f32 %v926, %v972
      %v974 = vsub.f32 1.0, %v973
      %v975 = vmul.f32 %v972, %v974
      %v976 = vadd.f32 %v972, %v975
      %vm977 = vweird.f32 %v926
      %vm978 = vweird.f32 %v972
      %vm979 = vmor %vm977, %vm978
      %v980 = vsel %vm979, %v972, %v976
      %v981 = vand.u32 2147483647, %v926
      %vm982 = vcmp.eq.f32.partialorder %v981, 8.507059e+37
      %v983 = vand.u32 %v926, 2147483648
      %v984 = vor.u32 1.1754944e-38, %v983
      %v985 = vsel %vm982, %v984, %v980
      %v986 = vmul.f32 1.0, %v985
      %v987 = vmul.f32 %v941, %v903
      %v988 = vmul.f32 %v956, %v904
      %v989 = vmul.f32 %v971, %v905
      %v990 = vmul.f32 %v986, %v906
      %991 = vst [vmem:[#allocation10] sm:$0xff] %v987
      %992 = vst [vmem:[#allocation10 + $0x8] sm:$0xff] %v988
      %993 = vst [vmem:[#allocation10 + $0x10] sm:$0xff] %v989
      %994 = vst [vmem:[#allocation10 + $0x18] sm:$0xff] %v990
    $region33: #{tpu_custom_call.1} parent=1 // pred_fallthru
      _
    // Predicated region
    $region34: #{tpu_custom_call.1} parent=1 // pred_check
      _
    $region35: #{tpu_custom_call.1} parent=1 // pred_check_branch
      %996 = sbr.rel (0) target = $region37
    $region36: #{tpu_custom_call.1} parent=1 // pred_region
      %998 = vsyncadd [#allocation7], 0
      %s999 = sshll.u32 [#allocation10], 4
      %s1000 = int_to_ptr.vmem [resolvable:$true] %s999
      %s1001 = sshll.u32 %s4, 4
      %s1002 = int_to_ptr.hbm [resolvable:$true] %s1001
      %1007 = dma.vmem_to_hbm [thread:$0]  %s1000, 512, %s1002, [#allocation7], 256, 256, 16
    $region37: #{tpu_custom_call.1} parent=1 // pred_fallthru
      _
    // Predicated region
    $region38: #{tpu_custom_call.1} parent=1 // pred_check
      _
    $region39: #{tpu_custom_call.1} parent=1 // pred_check_branch
      %1009 = sbr.rel (0) target = $region41
    $region40: #{tpu_custom_call.1} parent=1 // pred_region
      %1011 = dma.done [#allocation7], 512
    $region41: #{tpu_custom_call.1} parent=1 // pred_fallthru
      _
    %1012 = vsyncpa [#allocation6], 1
    %1013 = vsyncpa [#allocation9], 1
    %1014 = vsyncpa [#allocation7], 1

</llo_original>
